<compile_context>
chip_gen: v7x
topology: tpu7x:2x2x1
jax: 0.10.0
libtpu: 0.0.40
codegen_flags: <defaults>
</compile_context>

<pallas_src>
import functools

import jax
import jax.numpy as jnp
from jax.experimental import pallas as pl
from jax.experimental.pallas import tpu as pltpu

EPS = 1e-5
_HI = jax.lax.Precision.HIGHEST

KERNEL_PARAM_ORDER = [
    "w_in", "b_in",
    "b1_w1", "b1_b1", "b1_w2", "b1_b2", "b1_a",
    "b2_w1wd", "b2_b1", "b2_w2", "b2_b2", "b2_a",
    "b3_w1", "b3_b1", "b3_w2", "b3_b2", "b3_a",
    "w_out", "b_out",
]

_TIME_QUANTUM = 16 * 27  # time-tile granule: multiple of 27 (pool^3) and 16.


def _round_up(x, m):
    return (x + m - 1) // m * m


# -------------------------------- kernel -----------------------------------
def _make_kernel(b_tile, n_tchunks, t_fin_total, c1):
    inv_t = 1.0 / float(t_fin_total)

    def _mm(a, w):
        # bf16 inputs, f32 accumulation on the MXU.
        return jnp.dot(a.astype(jnp.bfloat16), w,
                       preferred_element_type=jnp.float32)

    def _prelu(h, a):
        # nn.PReLU() default: single scalar slope.
        return jnp.where(h >= 0, h, a * h)

    def _pool3(h, scratch):
        # nn.MaxPool1d(3): contiguous store + 3 strided sublane reads (no
        # (m//3, 3, c) reshape -> no sublane relayout of the big activations).
        m = h.shape[0]
        scratch[...] = h
        r0 = scratch[pl.ds(0, m // 3, stride=3), :]
        r1 = scratch[pl.ds(1, m // 3, stride=3), :]
        r2 = scratch[pl.ds(2, m // 3, stride=3), :]
        return jnp.maximum(jnp.maximum(r0, r1), r2)

    def kernel(x_ref, w_in_ref, b_in_ref,
               b1_w1_ref, b1_b1_ref, b1_w2_ref, b1_b2_ref, b1_a_ref,
               b2_w1wd_ref, b2_b1_ref, b2_w2_ref, b2_b2_ref, b2_a_ref,
               b3_w1_ref, b3_b1_ref, b3_w2_ref, b3_b2_ref, b3_a_ref,
               w_out_ref, b_out_ref,
               out_ref, acc_ref, p1_ref, p2_ref, p3_ref):
        j = pl.program_id(1)

        @pl.when(j == 0)
        def _():
            acc_ref[...] = jnp.zeros_like(acc_ref)

        # PReLU scalar slopes: read SMEM once.
        a11 = b1_a_ref[0]
        a12 = b1_a_ref[1]
        a21 = b2_a_ref[0]
        a22 = b2_a_ref[1]
        a31 = b3_a_ref[0]
        a32 = b3_a_ref[1]

        # ChannelWiseLayerNorm: input streamed bf16, stats in f32.
        x = x_ref[...].astype(jnp.float32)               # (rows, C_in)
        mu = jnp.mean(x, axis=-1, keepdims=True)
        xc = x - mu
        var = jnp.mean(jnp.square(xc), axis=-1, keepdims=True)
        xn = xc * jax.lax.rsqrt(var + EPS)

        # Conv1D(3C, C, 1): pointwise conv == channel matmul (LN affine folded).
        h = _mm(xn, w_in_ref[...]) + b_in_ref[...]       # (rows, C0) f32

        # --- ResBlock 1 (C0 -> C0) ---
        y = _prelu(_mm(h, b1_w1_ref[...]) + b1_b1_ref[...], a11)
        y = _mm(y, b1_w2_ref[...]) + b1_b2_ref[...]
        h1 = _pool3(_prelu(y + h, a12), p1_ref)          # (rows/3, C0)

        # --- ResBlock 2 (C0 -> C1, downsample) ---
        # conv1 and conv_downsample share the LHS -> one fused (C0, 2*C1) matmul.
        z = _mm(h1, b2_w1wd_ref[...])                    # (rows/3, 2*C1)
        y = _prelu(z[:, :c1] + b2_b1_ref[...], a21)
        y = _mm(y, b2_w2_ref[...]) + b2_b2_ref[...]
        h2 = _pool3(_prelu(y + z[:, c1:], a22), p2_ref)  # (rows/9, C1)

        # --- ResBlock 3 (C1 -> C1) ---
        y = _prelu(_mm(h2, b3_w1_ref[...]) + b3_b1_ref[...], a31)
        y = _mm(y, b3_w2_ref[...]) + b3_b2_ref[...]
        h3 = _pool3(_prelu(y + h2, a32), p3_ref)         # (rows/27, C1)

        # Per-element time sum, accumulated across time chunks (f32).
        if b_tile == 1:
            s = jnp.sum(h3, axis=0, keepdims=True)       # (1, C1)
        else:
            t_fin_chunk = h3.shape[0] // b_tile
            s = jnp.sum(h3.reshape(b_tile, t_fin_chunk, c1), axis=1)
        acc_ref[...] += s

        # Finalize: mean over time, then Conv1D(2C, C_emb, 1) on the tiny mean
        # (mean commutes with the pointwise conv).
        @pl.when(j == n_tchunks - 1)
        def _():
            m = acc_ref[...] * inv_t                      # (b_tile, C1)
            e = _mm(m, w_out_ref[...]) + b_out_ref[...]   # (b_tile, C_emb_p)
            out_ref[...] = e.reshape(out_ref.shape).astype(out_ref.dtype)

    return kernel


# ---------------------- wrapper-side parameter folding ----------------------
def fold_params(params):
    """Fold eval-mode BN and the LayerNorm affine into conv weights/biases.

    Call ONCE per parameter set (serving path); the result is what the
    jit-ted forward consumes.
    """
    f32, bf16 = jnp.float32, jnp.bfloat16

    def fold_bn(w, bn):
        gamma, beta, mean, var = bn[0], bn[1], bn[2], bn[3]
        s = gamma * jax.lax.rsqrt(var + EPS)              # (Cout,)
        return (w * s[None, :]).astype(f32), (beta - mean * s)[None, :].astype(f32)

    out = {}
    # LayerNorm affine folded into the first conv:
    #   (x_norm*g + b) @ W + bias == x_norm @ (g[:,None]*W) + (b @ W + bias)
    g = params["ln_w"][0]
    b = params["ln_b"][0]
    w_in = params["w_in"]
    out["w_in"] = (w_in * g[:, None]).astype(bf16)
    out["b_in"] = (params["b_in"] +
                   jnp.matmul(b, w_in, precision=_HI)).astype(f32)

    for blk in ("b1", "b2", "b3"):
        w1, b1 = fold_bn(params[blk + "_w1"], params[blk + "_bn1"])
        w2, b2 = fold_bn(params[blk + "_w2"], params[blk + "_bn2"])
        if blk == "b2":
            # Shared-LHS fusion: [conv1 | conv_downsample] -> one (C0, 2*C1)
            # weight (composed in f32, single bf16 cast).
            out["b2_w1wd"] = jnp.concatenate(
                [w1, params["b2_wd"].astype(f32)], axis=1).astype(bf16)
        else:
            out[blk + "_w1"] = w1.astype(bf16)
        out[blk + "_b1"] = b1
        out[blk + "_w2"] = w2.astype(bf16)
        out[blk + "_b2"] = b2
        out[blk + "_a"] = params[blk + "_a"].astype(f32)

    # Output projection: pad C_emb to a lane-dense multiple of 128.
    w_out = params["w_out"].astype(f32)
    b_out = params["b_out"].astype(f32)
    c_emb = w_out.shape[1]
    c_emb_p = _round_up(c_emb, 128)
    if c_emb_p != c_emb:
        w_out = jnp.pad(w_out, ((0, 0), (0, c_emb_p - c_emb)))
        b_out = jnp.pad(b_out, ((0, 0), (0, c_emb_p - c_emb)))
    out["w_out"] = w_out.astype(bf16)
    out["b_out"] = b_out
    return out


# ------------------------------ tile picking --------------------------------
def _per_row_bytes(c_in, c0, c1):
    # Rough per-row VMEM footprint of one grid step.
    return (2 * 2 * c_in                          # double-buffered bf16 input
            + 8 * c_in                            # f32 x + centered copy
            + 8 * (c0 + c1)                       # live f32 activations (rough)
            + 4 * (c0 + c1 // 3 + c1 // 9))       # f32 pool scratch


def _pick_tiles(n, t, c_in, c0, c1):
    """Pick (b_tile, t_tile).  b_tile > 1 implies t_tile == T; b_tile == 1
    allows time tiling (t_tile | T, multiple of 432 so rows stay tile-aligned).
    Targets ~2048 MXU rows per step within a v7x-safe VMEM budget and keeps
    >= 2 grid steps on the batch axis when possible (two TensorCores)."""
    target_rows = 2048
    budget = 28 * 1024 * 1024
    per_row = _per_row_bytes(c_in, c0, c1)
    max_rows = max(budget // per_row, _TIME_QUANTUM)

    # Time tiling (b_tile == 1): when one element's full T blows the budget, or
    # batch==1 and chunking restores double-buffered pipelining.
    if t % _TIME_QUANTUM == 0:
        chunks = t // _TIME_QUANTUM
        if (t > max_rows) or (n == 1 and chunks >= 2):
            best_k = None
            for k in range(1, chunks + 1):
                if chunks % k:
                    continue
                rows = _TIME_QUANTUM * k
                if rows > max_rows and best_k is not None:
                    break
                best_k = k
                if rows >= target_rows:
                    break
            if best_k is not None and best_k < chunks:
                return 1, _TIME_QUANTUM * best_k

    # Full-T mode: fuse b_tile batch elements per grid step.
    cands = [b for b in range(1, n + 1)
             if n % b == 0 and (b == n or (b * t) % 16 == 0)]
    feasible = [b for b in cands if b * t <= max_rows] or cands[:1]
    pick = feasible[-1]
    for b in feasible:
        if b * t >= target_rows:
            pick = b
            break
    if n // pick < 2:                       # keep both v7x TensorCores busy
        two_step = [b for b in feasible if n // b >= 2]
        if two_step:
            pick = two_step[-1]
    return pick, t


def _vmem_limit_bytes(rows, c_in, c0, c1, c_emb_p):
    weights = 2 * (c_in * c0 + 2 * c0 * c0 + 2 * c0 * c1
                   + 2 * c1 * c1 + c1 * c_emb_p)
    est = rows * _per_row_bytes(c_in, c0, c1) + 2 * weights + (2 << 20)
    # 32-48 MiB is safe on v5e/v6e (128 MiB) and v7x (64 MiB physical).
    return int(min(max(est, 32 << 20), 48 << 20))


# -------------------------------- wrapper -----------------------------------
def resnet4spex_forward_ntc(x_ntc, kparams, c_emb, *, b_tile=None, t_tile=None):
    """x_ntc: (N, T, C_in) channels-last; kparams = fold_params(params).
    Returns (N, c_emb)."""
    n, t, c_in = x_ntc.shape
    assert t % 27 == 0, "T must be divisible by 27 (three MaxPool1d(3) stages)"
    c0 = kparams["w_in"].shape[1]
    c1 = kparams["b2_w2"].shape[0]
    c_emb_p = kparams["w_out"].shape[1]

    if b_tile is None or t_tile is None:
        pb, pt = _pick_tiles(n, t, c_in, c0, c1)
        b_tile = pb if b_tile is None else b_tile
        t_tile = pt if t_tile is None else t_tile
    assert n % b_tile == 0 and t % t_tile == 0 and t_tile % 27 == 0
    assert b_tile == 1 or t_tile == t
    n_tchunks = t // t_tile
    nb = n // b_tile
    rows = b_tile * t_tile

    # bf16 input stream: halves HBM traffic and the VMEM input block.
    x_flat = x_ntc.astype(jnp.bfloat16).reshape(n * t, c_in)

    in_specs = [pl.BlockSpec((rows, c_in),
                             lambda i, j: (i * n_tchunks + j, 0))]
    args = [x_flat]
    for name in KERNEL_PARAM_ORDER:
        arr = kparams[name]
        if name.endswith("_a"):
            # PReLU scalar slopes live in SMEM.
            in_specs.append(pl.BlockSpec(memory_space=pltpu.MemorySpace.SMEM))
        else:
            nd = arr.ndim
            in_specs.append(
                pl.BlockSpec(arr.shape, lambda i, j, _nd=nd: (0,) * _nd))
        args.append(arr)

    kernel = _make_kernel(b_tile, n_tchunks, t // 27, c1)

    out3 = pl.pallas_call(
        kernel,
        out_shape=jax.ShapeDtypeStruct((nb, b_tile, c_emb_p), jnp.float32),
        grid_spec=pltpu.PrefetchScalarGridSpec(
            num_scalar_prefetch=0,
            grid=(nb, n_tchunks),
            in_specs=in_specs,
            out_specs=pl.BlockSpec((1, b_tile, c_emb_p),
                                   lambda i, j: (i, 0, 0)),
            scratch_shapes=[
                pltpu.VMEM((b_tile, c1), jnp.float32),       # time-mean acc
                pltpu.VMEM((rows, c0), jnp.float32),         # pool1 staging
                pltpu.VMEM((rows // 3, c1), jnp.float32),    # pool2 staging
                pltpu.VMEM((rows // 9, c1), jnp.float32),    # pool3 staging
            ],
        ),
        compiler_params=pltpu.CompilerParams(
            dimension_semantics=("parallel", "arbitrary"),
            vmem_limit_bytes=_vmem_limit_bytes(rows, c_in, c0, c1, c_emb_p)),
    )(*args)
    return out3.reshape(n, c_emb_p)[:, :c_emb]


def resnet4spex_forward(x_nct, params, *, b_tile=None, t_tile=None):
    """Convenience path: (N, 3*C, T) PyTorch NCT input, unfolded params.
    For serving, fold once with fold_params and jit resnet4spex_forward_ntc."""
    kparams = fold_params(params)
    c_emb = params["w_out"].shape[1]
    x = jnp.transpose(x_nct, (0, 2, 1))
    return resnet4spex_forward_ntc(x, kparams, c_emb,
                                   b_tile=b_tile, t_tile=t_tile)


# ----------------------------- params / reference ---------------------------
def make_params(key, c_in, c0, c1, c_emb):
    keys = iter(jax.random.split(key, 64))

    def nrm(shape, scale=1.0):
        return (scale * jax.random.normal(next(keys), shape)).astype(jnp.float32)

    def conv_w(ci, co):   # PyTorch conv weight (co, ci, 1) stored as (ci, co)
        return nrm((ci, co), scale=float(ci) ** -0.5)

    def bn(c):            # rows: gamma, beta, running_mean, running_var
        gamma = 1.0 + 0.1 * jax.random.normal(next(keys), (c,))
        beta = 0.1 * jax.random.normal(next(keys), (c,))
        mean = 0.1 * jax.random.normal(next(keys), (c,))
        var = jax.random.uniform(next(keys), (c,), minval=0.5, maxval=1.5)
        return jnp.stack([gamma, beta, mean, var]).astype(jnp.float32)

    return {
        "ln_w": (1.0 + 0.1 * jax.random.normal(next(keys), (1, c_in))).astype(jnp.float32),
        "ln_b": nrm((1, c_in), 0.1),
        "w_in": conv_w(c_in, c0), "b_in": nrm((1, c0), 0.1),
        "b1_w1": conv_w(c0, c0), "b1_bn1": bn(c0),
        "b1_w2": conv_w(c0, c0), "b1_bn2": bn(c0),
        "b1_a": jnp.array([0.25, 0.20], dtype=jnp.float32),
        "b2_w1": conv_w(c0, c1), "b2_bn1": bn(c1),
        "b2_w2": conv_w(c1, c1), "b2_bn2": bn(c1),
        "b2_wd": conv_w(c0, c1),
        "b2_a": jnp.array([0.30, 0.15], dtype=jnp.float32),
        "b3_w1": conv_w(c1, c1), "b3_bn1": bn(c1),
        "b3_w2": conv_w(c1, c1), "b3_bn2": bn(c1),
        "b3_a": jnp.array([0.10, 0.25], dtype=jnp.float32),
        "w_out": conv_w(c1, c_emb), "b_out": nrm((1, c_emb), 0.1),
    }


def reference_forward(x_nct, params):
    x = jnp.transpose(x_nct, (0, 2, 1)).astype(jnp.float32)
    mu = jnp.mean(x, -1, keepdims=True)
    var = jnp.mean(jnp.square(x - mu), -1, keepdims=True)
    x = (x - mu) / jnp.sqrt(var + EPS) * params["ln_w"] + params["ln_b"]

    def mm(a, b): return jnp.matmul(a, b, precision=_HI)
    def bn(h, p): return (h - p[2]) / jnp.sqrt(p[3] + EPS) * p[0] + p[1]
    def prelu(h, a): return jnp.where(h >= 0, h, a * h)

    def pool(h):
        n_, t_, c_ = h.shape
        to = t_ // 3
        return jnp.max(h[:, :to * 3].reshape(n_, to, 3, c_), axis=2)

    def block(h, pre, wd=None):
        res = h
        y = mm(h, params[pre + "_w1"])
        y = bn(y, params[pre + "_bn1"])
        y = prelu(y, params[pre + "_a"][0])
        y = mm(y, params[pre + "_w2"])
        y = bn(y, params[pre + "_bn2"])
        if wd is not None:
            res = mm(res, wd)
        y = prelu(y + res, params[pre + "_a"][1])
        return pool(y)

    h = mm(x, params["w_in"]) + params["b_in"]
    h = block(h, "b1")
    h = block(h, "b2", params["b2_wd"])
    h = block(h, "b3")
    h = mm(h, params["w_out"]) + params["b_out"]
    return jnp.mean(h, axis=1)


# ---------------------------------- main ------------------------------------
if __name__ == "__main__":
    # Small shapes consistent with the module structure:
    #   in: (N, 3*C, T) -> ... -> out: (N, C_emb), with T divisible by 27.
    N, T = 2, 54
    C_mid, C_big, C_emb = 64, 128, 64
    C_in = 3 * C_mid

    key = jax.random.PRNGKey(0)
    kx, kp = jax.random.split(key)
    x = jax.random.normal(kx, (N, C_in, T), dtype=jnp.float32)  # NCT like PyTorch
    params = make_params(kp, C_in, C_mid, C_big, C_emb)

    # Serving path: fold BN/LN once, jit the NTC forward (no re-fold per call).
    kparams = fold_params(params)
    fwd_ntc = jax.jit(functools.partial(resnet4spex_forward_ntc, c_emb=C_emb))
    x_ntc = jnp.transpose(x, (0, 2, 1))
    out = fwd_ntc(x_ntc, kparams)
    out = jax.block_until_ready(out)

    ref = reference_forward(x, params)
    err = float(jnp.max(jnp.abs(out - ref)))
    assert out.shape == (N, C_emb), out.shape
    # Tolerance accounts for bf16 matmul inputs + bf16 input streaming.
    assert err < 6e-2, f"max abs err vs reference: {err}"
    print("KERNEL_OK")
</pallas_src>

<mosaic_0001>
module attributes {stable_mosaic.version = 11 : i64} {
  func.func @kernel(%arg0: i32, %arg1: i32, %arg2: memref<108x192xbf16, #tpu.memory_space<vmem>>, %arg3: memref<192x64xbf16, #tpu.memory_space<vmem>>, %arg4: memref<1x64xf32, #tpu.memory_space<vmem>>, %arg5: memref<64x64xbf16, #tpu.memory_space<vmem>>, %arg6: memref<1x64xf32, #tpu.memory_space<vmem>>, %arg7: memref<64x64xbf16, #tpu.memory_space<vmem>>, %arg8: memref<1x64xf32, #tpu.memory_space<vmem>>, %arg9: memref<2xf32, #tpu.memory_space<smem>>, %arg10: memref<64x256xbf16, #tpu.memory_space<vmem>>, %arg11: memref<1x128xf32, #tpu.memory_space<vmem>>, %arg12: memref<128x128xbf16, #tpu.memory_space<vmem>>, %arg13: memref<1x128xf32, #tpu.memory_space<vmem>>, %arg14: memref<2xf32, #tpu.memory_space<smem>>, %arg15: memref<128x128xbf16, #tpu.memory_space<vmem>>, %arg16: memref<1x128xf32, #tpu.memory_space<vmem>>, %arg17: memref<128x128xbf16, #tpu.memory_space<vmem>>, %arg18: memref<1x128xf32, #tpu.memory_space<vmem>>, %arg19: memref<2xf32, #tpu.memory_space<smem>>, %arg20: memref<128x128xbf16, #tpu.memory_space<vmem>>, %arg21: memref<1x128xf32, #tpu.memory_space<vmem>>, %arg22: memref<1x2x128xf32, #tpu.memory_space<vmem>>, %arg23: memref<2x128xf32, #tpu.memory_space<vmem>>, %arg24: memref<108x64xf32, #tpu.memory_space<vmem>>, %arg25: memref<36x128xf32, #tpu.memory_space<vmem>>, %arg26: memref<12x128xf32, #tpu.memory_space<vmem>>) attributes {dimension_semantics = [#tpu.dimension_semantics<parallel>, #tpu.dimension_semantics<arbitrary>], iteration_bounds = array<i64: 1, 1>, scalar_prefetch = 0 : i64, scratch_operands = 4 : i64, tpu.core_type = #tpu.core_type<tc>, window_params = [{transform_indices = @transform_0, window_bounds = array<i64: 108, 192>}, {pipeline_mode = #tpu.pipeline_mode<synchronous>, transform_indices = @transform_1, window_bounds = array<i64: 192, 64>}, {pipeline_mode = #tpu.pipeline_mode<synchronous>, transform_indices = @transform_2, window_bounds = array<i64: 1, 64>}, {pipeline_mode = #tpu.pipeline_mode<synchronous>, transform_indices = @transform_3, window_bounds = array<i64: 64, 64>}, {pipeline_mode = #tpu.pipeline_mode<synchronous>, transform_indices = @transform_4, window_bounds = array<i64: 1, 64>}, {pipeline_mode = #tpu.pipeline_mode<synchronous>, transform_indices = @transform_5, window_bounds = array<i64: 64, 64>}, {pipeline_mode = #tpu.pipeline_mode<synchronous>, transform_indices = @transform_6, window_bounds = array<i64: 1, 64>}, {transform_indices = @transform_7, window_bounds = array<i64: 2>}, {pipeline_mode = #tpu.pipeline_mode<synchronous>, transform_indices = @transform_8, window_bounds = array<i64: 64, 256>}, {pipeline_mode = #tpu.pipeline_mode<synchronous>, transform_indices = @transform_9, window_bounds = array<i64: 1, 128>}, {pipeline_mode = #tpu.pipeline_mode<synchronous>, transform_indices = @transform_10, window_bounds = array<i64: 128, 128>}, {pipeline_mode = #tpu.pipeline_mode<synchronous>, transform_indices = @transform_11, window_bounds = array<i64: 1, 128>}, {transform_indices = @transform_12, window_bounds = array<i64: 2>}, {pipeline_mode = #tpu.pipeline_mode<synchronous>, transform_indices = @transform_13, window_bounds = array<i64: 128, 128>}, {pipeline_mode = #tpu.pipeline_mode<synchronous>, transform_indices = @transform_14, window_bounds = array<i64: 1, 128>}, {pipeline_mode = #tpu.pipeline_mode<synchronous>, transform_indices = @transform_15, window_bounds = array<i64: 128, 128>}, {pipeline_mode = #tpu.pipeline_mode<synchronous>, transform_indices = @transform_16, window_bounds = array<i64: 1, 128>}, {transform_indices = @transform_17, window_bounds = array<i64: 2>}, {pipeline_mode = #tpu.pipeline_mode<synchronous>, transform_indices = @transform_18, window_bounds = array<i64: 128, 128>}, {pipeline_mode = #tpu.pipeline_mode<synchronous>, transform_indices = @transform_19, window_bounds = array<i64: 1, 128>}, {transform_indices = @transform_20, window_bounds = array<i64: 1, 2, 128>}]} {
    %c0_i32 = arith.constant 0 : i32
    %0 = arith.cmpi eq, %arg1, %c0_i32 : i32
    %1 = arith.extui %0 : i1 to i32
    %c0_i32_0 = arith.constant 0 : i32
    %2 = arith.cmpi ne, %1, %c0_i32_0 : i32
    scf.if %2 {
      %cst_82 = arith.constant 0.000000e+00 : f32
      %130 = vector.broadcast %cst_82 : f32 to vector<2x128xf32>
      %c0_83 = arith.constant 0 : index
      %c0_84 = arith.constant 0 : index
      %131 = vector.load %arg23[%c0_83, %c0_84] : memref<2x128xf32, #tpu.memory_space<vmem>>, vector<2x128xf32>
      tpu.vector_store %arg23[%c0_83, %c0_84], %130 {strides = array<i32>} : memref<2x128xf32, #tpu.memory_space<vmem>>, vector<2x128xf32>,
    } else {
    }
    %c0 = arith.constant 0 : index
    %3 = memref.load %arg9[%c0] : memref<2xf32, #tpu.memory_space<smem>>
    %c1 = arith.constant 1 : index
    %4 = memref.load %arg9[%c1] : memref<2xf32, #tpu.memory_space<smem>>
    %c0_1 = arith.constant 0 : index
    %5 = memref.load %arg14[%c0_1] : memref<2xf32, #tpu.memory_space<smem>>
    %c1_2 = arith.constant 1 : index
    %6 = memref.load %arg14[%c1_2] : memref<2xf32, #tpu.memory_space<smem>>
    %c0_3 = arith.constant 0 : index
    %7 = memref.load %arg19[%c0_3] : memref<2xf32, #tpu.memory_space<smem>>
    %c1_4 = arith.constant 1 : index
    %8 = memref.load %arg19[%c1_4] : memref<2xf32, #tpu.memory_space<smem>>
    %c0_5 = arith.constant 0 : index
    %c0_6 = arith.constant 0 : index
    %9 = vector.load %arg2[%c0_5, %c0_6] : memref<108x192xbf16, #tpu.memory_space<vmem>>, vector<108x192xbf16>
    %10 = arith.extf %9 : vector<108x192xbf16> to vector<108x192xf32>
    %cst = arith.constant dense<0.000000e+00> : vector<108xf32>
    %11 = vector.multi_reduction <add>, %10, %cst [1] : vector<108x192xf32> to vector<108xf32>
    %12 = vector.shape_cast %11 : vector<108xf32> to vector<108x1xf32>
    %cst_7 = arith.constant 1.920000e+02 : f32
    %13 = vector.broadcast %cst_7 : f32 to vector<108x1xf32>
    %14 = arith.divf %12, %13 : vector<108x1xf32>
    %15 = vector.broadcast %14 : vector<108x1xf32> to vector<108x192xf32>
    %16 = arith.subf %10, %15 : vector<108x192xf32>
    %17 = arith.mulf %16, %16 : vector<108x192xf32>
    %cst_8 = arith.constant dense<0.000000e+00> : vector<108xf32>
    %18 = vector.multi_reduction <add>, %17, %cst_8 [1] : vector<108x192xf32> to vector<108xf32>
    %19 = vector.shape_cast %18 : vector<108xf32> to vector<108x1xf32>
    %cst_9 = arith.constant 1.920000e+02 : f32
    %20 = vector.broadcast %cst_9 : f32 to vector<108x1xf32>
    %21 = arith.divf %19, %20 : vector<108x1xf32>
    %cst_10 = arith.constant 9.99999974E-6 : f32
    %22 = vector.broadcast %cst_10 : f32 to vector<108x1xf32>
    %23 = arith.addf %21, %22 : vector<108x1xf32>
    %24 = math.rsqrt %23 : vector<108x1xf32>
    %25 = vector.broadcast %24 : vector<108x1xf32> to vector<108x192xf32>
    %26 = arith.mulf %16, %25 : vector<108x192xf32>
    %c0_11 = arith.constant 0 : index
    %c0_12 = arith.constant 0 : index
    %27 = vector.load %arg3[%c0_11, %c0_12] : memref<192x64xbf16, #tpu.memory_space<vmem>>, vector<192x64xbf16>
    %28 = arith.truncf %26 : vector<108x192xf32> to vector<108x192xbf16>
    %cst_13 = arith.constant dense<0.000000e+00> : vector<108x64xf32>
    %29 = tpu.matmul %28, %27, %cst_13 {dimension_numbers = #tpu.dot_dimension_numbers<[1], [0], [0], [1], [0, 0, 1, 1], [], []>} : vector<108x192xbf16>, vector<192x64xbf16>, vector<108x64xf32> -> vector<108x64xf32>
    %c0_14 = arith.constant 0 : index
    %c0_15 = arith.constant 0 : index
    %30 = vector.load %arg4[%c0_14, %c0_15] : memref<1x64xf32, #tpu.memory_space<vmem>>, vector<1x64xf32>
    %31 = vector.broadcast %30 : vector<1x64xf32> to vector<108x64xf32>
    %32 = arith.addf %29, %31 : vector<108x64xf32>
    %c0_16 = arith.constant 0 : index
    %c0_17 = arith.constant 0 : index
    %33 = vector.load %arg5[%c0_16, %c0_17] : memref<64x64xbf16, #tpu.memory_space<vmem>>, vector<64x64xbf16>
    %34 = arith.truncf %32 : vector<108x64xf32> to vector<108x64xbf16>
    %cst_18 = arith.constant dense<0.000000e+00> : vector<108x64xf32>
    %35 = tpu.matmul %34, %33, %cst_18 {dimension_numbers = #tpu.dot_dimension_numbers<[1], [0], [0], [1], [0, 0, 1, 1], [], []>} : vector<108x64xbf16>, vector<64x64xbf16>, vector<108x64xf32> -> vector<108x64xf32>
    %c0_19 = arith.constant 0 : index
    %c0_20 = arith.constant 0 : index
    %36 = vector.load %arg6[%c0_19, %c0_20] : memref<1x64xf32, #tpu.memory_space<vmem>>, vector<1x64xf32>
    %37 = vector.broadcast %36 : vector<1x64xf32> to vector<108x64xf32>
    %38 = arith.addf %35, %37 : vector<108x64xf32>
    %cst_21 = arith.constant 0.000000e+00 : f32
    %39 = vector.broadcast %cst_21 : f32 to vector<108x64xf32>
    %40 = arith.cmpf oge, %38, %39 : vector<108x64xf32>
    %41 = vector.broadcast %3 : f32 to vector<108x64xf32>
    %42 = arith.mulf %41, %38 : vector<108x64xf32>
    %43 = arith.select %40, %38, %42 : vector<108x64xi1>, vector<108x64xf32>
    %c0_22 = arith.constant 0 : index
    %c0_23 = arith.constant 0 : index
    %44 = vector.load %arg7[%c0_22, %c0_23] : memref<64x64xbf16, #tpu.memory_space<vmem>>, vector<64x64xbf16>
    %45 = arith.truncf %43 : vector<108x64xf32> to vector<108x64xbf16>
    %cst_24 = arith.constant dense<0.000000e+00> : vector<108x64xf32>
    %46 = tpu.matmul %45, %44, %cst_24 {dimension_numbers = #tpu.dot_dimension_numbers<[1], [0], [0], [1], [0, 0, 1, 1], [], []>} : vector<108x64xbf16>, vector<64x64xbf16>, vector<108x64xf32> -> vector<108x64xf32>
    %c0_25 = arith.constant 0 : index
    %c0_26 = arith.constant 0 : index
    %47 = vector.load %arg8[%c0_25, %c0_26] : memref<1x64xf32, #tpu.memory_space<vmem>>, vector<1x64xf32>
    %48 = vector.broadcast %47 : vector<1x64xf32> to vector<108x64xf32>
    %49 = arith.addf %46, %48 : vector<108x64xf32>
    %50 = arith.addf %49, %32 : vector<108x64xf32>
    %cst_27 = arith.constant 0.000000e+00 : f32
    %51 = vector.broadcast %cst_27 : f32 to vector<108x64xf32>
    %52 = arith.cmpf oge, %50, %51 : vector<108x64xf32>
    %53 = vector.broadcast %4 : f32 to vector<108x64xf32>
    %54 = arith.mulf %53, %50 : vector<108x64xf32>
    %55 = arith.select %52, %50, %54 : vector<108x64xi1>, vector<108x64xf32>
    %c0_28 = arith.constant 0 : index
    %c0_29 = arith.constant 0 : index
    %56 = vector.load %arg24[%c0_28, %c0_29] : memref<108x64xf32, #tpu.memory_space<vmem>>, vector<108x64xf32>
    tpu.vector_store %arg24[%c0_28, %c0_29], %55 {strides = array<i32>} : memref<108x64xf32, #tpu.memory_space<vmem>>, vector<108x64xf32>,
    %c0_30 = arith.constant 0 : index
    %c0_31 = arith.constant 0 : index
    %57 = tpu.strided_load %arg24[%c0_30, %c0_31] {strides = array<i32: 3, 1>} : memref<108x64xf32, #tpu.memory_space<vmem>>, vector<36x64xf32>
    %c1_32 = arith.constant 1 : index
    %c0_33 = arith.constant 0 : index
    %58 = tpu.strided_load %arg24[%c1_32, %c0_33] {strides = array<i32: 3, 1>} : memref<108x64xf32, #tpu.memory_space<vmem>>, vector<36x64xf32>
    %c2 = arith.constant 2 : index
    %c0_34 = arith.constant 0 : index
    %59 = tpu.strided_load %arg24[%c2, %c0_34] {strides = array<i32: 3, 1>} : memref<108x64xf32, #tpu.memory_space<vmem>>, vector<36x64xf32>
    %60 = arith.maximumf %57, %58 : vector<36x64xf32>
    %61 = arith.maximumf %60, %59 : vector<36x64xf32>
    %c0_35 = arith.constant 0 : index
    %c0_36 = arith.constant 0 : index
    %62 = vector.load %arg10[%c0_35, %c0_36] : memref<64x256xbf16, #tpu.memory_space<vmem>>, vector<64x256xbf16>
    %63 = arith.truncf %61 : vector<36x64xf32> to vector<36x64xbf16>
    %cst_37 = arith.constant dense<0.000000e+00> : vector<36x256xf32>
    %64 = tpu.matmul %63, %62, %cst_37 {dimension_numbers = #tpu.dot_dimension_numbers<[1], [0], [0], [1], [0, 0, 1, 1], [], []>} : vector<36x64xbf16>, vector<64x256xbf16>, vector<36x256xf32> -> vector<36x256xf32>
    %65 = vector.extract_strided_slice %64 {offsets = [0, 0], sizes = [36, 128], strides = [1, 1]} : vector<36x256xf32> to vector<36x128xf32>
    %c0_38 = arith.constant 0 : index
    %c0_39 = arith.constant 0 : index
    %66 = vector.load %arg11[%c0_38, %c0_39] : memref<1x128xf32, #tpu.memory_space<vmem>>, vector<1x128xf32>
    %67 = vector.broadcast %66 : vector<1x128xf32> to vector<36x128xf32>
    %68 = arith.addf %65, %67 : vector<36x128xf32>
    %cst_40 = arith.constant 0.000000e+00 : f32
    %69 = vector.broadcast %cst_40 : f32 to vector<36x128xf32>
    %70 = arith.cmpf oge, %68, %69 : vector<36x128xf32>
    %71 = vector.broadcast %5 : f32 to vector<36x128xf32>
    %72 = arith.mulf %71, %68 : vector<36x128xf32>
    %73 = arith.select %70, %68, %72 : vector<36x128xi1>, vector<36x128xf32>
    %c0_41 = arith.constant 0 : index
    %c0_42 = arith.constant 0 : index
    %74 = vector.load %arg12[%c0_41, %c0_42] : memref<128x128xbf16, #tpu.memory_space<vmem>>, vector<128x128xbf16>
    %75 = arith.truncf %73 : vector<36x128xf32> to vector<36x128xbf16>
    %cst_43 = arith.constant dense<0.000000e+00> : vector<36x128xf32>
    %76 = tpu.matmul %75, %74, %cst_43 {dimension_numbers = #tpu.dot_dimension_numbers<[1], [0], [0], [1], [0, 0, 1, 1], [], []>} : vector<36x128xbf16>, vector<128x128xbf16>, vector<36x128xf32> -> vector<36x128xf32>
    %c0_44 = arith.constant 0 : index
    %c0_45 = arith.constant 0 : index
    %77 = vector.load %arg13[%c0_44, %c0_45] : memref<1x128xf32, #tpu.memory_space<vmem>>, vector<1x128xf32>
    %78 = vector.broadcast %77 : vector<1x128xf32> to vector<36x128xf32>
    %79 = arith.addf %76, %78 : vector<36x128xf32>
    %80 = vector.extract_strided_slice %64 {offsets = [0, 128], sizes = [36, 128], strides = [1, 1]} : vector<36x256xf32> to vector<36x128xf32>
    %81 = arith.addf %79, %80 : vector<36x128xf32>
    %cst_46 = arith.constant 0.000000e+00 : f32
    %82 = vector.broadcast %cst_46 : f32 to vector<36x128xf32>
    %83 = arith.cmpf oge, %81, %82 : vector<36x128xf32>
    %84 = vector.broadcast %6 : f32 to vector<36x128xf32>
    %85 = arith.mulf %84, %81 : vector<36x128xf32>
    %86 = arith.select %83, %81, %85 : vector<36x128xi1>, vector<36x128xf32>
    %c0_47 = arith.constant 0 : index
    %c0_48 = arith.constant 0 : index
    %87 = vector.load %arg25[%c0_47, %c0_48] : memref<36x128xf32, #tpu.memory_space<vmem>>, vector<36x128xf32>
    tpu.vector_store %arg25[%c0_47, %c0_48], %86 {strides = array<i32>} : memref<36x128xf32, #tpu.memory_space<vmem>>, vector<36x128xf32>,
    %c0_49 = arith.constant 0 : index
    %c0_50 = arith.constant 0 : index
    %88 = tpu.strided_load %arg25[%c0_49, %c0_50] {strides = array<i32: 3, 1>} : memref<36x128xf32, #tpu.memory_space<vmem>>, vector<12x128xf32>
    %c1_51 = arith.constant 1 : index
    %c0_52 = arith.constant 0 : index
    %89 = tpu.strided_load %arg25[%c1_51, %c0_52] {strides = array<i32: 3, 1>} : memref<36x128xf32, #tpu.memory_space<vmem>>, vector<12x128xf32>
    %c2_53 = arith.constant 2 : index
    %c0_54 = arith.constant 0 : index
    %90 = tpu.strided_load %arg25[%c2_53, %c0_54] {strides = array<i32: 3, 1>} : memref<36x128xf32, #tpu.memory_space<vmem>>, vector<12x128xf32>
    %91 = arith.maximumf %88, %89 : vector<12x128xf32>
    %92 = arith.maximumf %91, %90 : vector<12x128xf32>
    %c0_55 = arith.constant 0 : index
    %c0_56 = arith.constant 0 : index
    %93 = vector.load %arg15[%c0_55, %c0_56] : memref<128x128xbf16, #tpu.memory_space<vmem>>, vector<128x128xbf16>
    %94 = arith.truncf %92 : vector<12x128xf32> to vector<12x128xbf16>
    %cst_57 = arith.constant dense<0.000000e+00> : vector<12x128xf32>
    %95 = tpu.matmul %94, %93, %cst_57 {dimension_numbers = #tpu.dot_dimension_numbers<[1], [0], [0], [1], [0, 0, 1, 1], [], []>} : vector<12x128xbf16>, vector<128x128xbf16>, vector<12x128xf32> -> vector<12x128xf32>
    %c0_58 = arith.constant 0 : index
    %c0_59 = arith.constant 0 : index
    %96 = vector.load %arg16[%c0_58, %c0_59] : memref<1x128xf32, #tpu.memory_space<vmem>>, vector<1x128xf32>
    %97 = vector.broadcast %96 : vector<1x128xf32> to vector<12x128xf32>
    %98 = arith.addf %95, %97 : vector<12x128xf32>
    %cst_60 = arith.constant 0.000000e+00 : f32
    %99 = vector.broadcast %cst_60 : f32 to vector<12x128xf32>
    %100 = arith.cmpf oge, %98, %99 : vector<12x128xf32>
    %101 = vector.broadcast %7 : f32 to vector<12x128xf32>
    %102 = arith.mulf %101, %98 : vector<12x128xf32>
    %103 = arith.select %100, %98, %102 : vector<12x128xi1>, vector<12x128xf32>
    %c0_61 = arith.constant 0 : index
    %c0_62 = arith.constant 0 : index
    %104 = vector.load %arg17[%c0_61, %c0_62] : memref<128x128xbf16, #tpu.memory_space<vmem>>, vector<128x128xbf16>
    %105 = arith.truncf %103 : vector<12x128xf32> to vector<12x128xbf16>
    %cst_63 = arith.constant dense<0.000000e+00> : vector<12x128xf32>
    %106 = tpu.matmul %105, %104, %cst_63 {dimension_numbers = #tpu.dot_dimension_numbers<[1], [0], [0], [1], [0, 0, 1, 1], [], []>} : vector<12x128xbf16>, vector<128x128xbf16>, vector<12x128xf32> -> vector<12x128xf32>
    %c0_64 = arith.constant 0 : index
    %c0_65 = arith.constant 0 : index
    %107 = vector.load %arg18[%c0_64, %c0_65] : memref<1x128xf32, #tpu.memory_space<vmem>>, vector<1x128xf32>
    %108 = vector.broadcast %107 : vector<1x128xf32> to vector<12x128xf32>
    %109 = arith.addf %106, %108 : vector<12x128xf32>
    %110 = arith.addf %109, %92 : vector<12x128xf32>
    %cst_66 = arith.constant 0.000000e+00 : f32
    %111 = vector.broadcast %cst_66 : f32 to vector<12x128xf32>
    %112 = arith.cmpf oge, %110, %111 : vector<12x128xf32>
    %113 = vector.broadcast %8 : f32 to vector<12x128xf32>
    %114 = arith.mulf %113, %110 : vector<12x128xf32>
    %115 = arith.select %112, %110, %114 : vector<12x128xi1>, vector<12x128xf32>
    %c0_67 = arith.constant 0 : index
    %c0_68 = arith.constant 0 : index
    %116 = vector.load %arg26[%c0_67, %c0_68] : memref<12x128xf32, #tpu.memory_space<vmem>>, vector<12x128xf32>
    tpu.vector_store %arg26[%c0_67, %c0_68], %115 {strides = array<i32>} : memref<12x128xf32, #tpu.memory_space<vmem>>, vector<12x128xf32>,
    %c0_69 = arith.constant 0 : index
    %c0_70 = arith.constant 0 : index
    %117 = tpu.strided_load %arg26[%c0_69, %c0_70] {strides = array<i32: 3, 1>} : memref<12x128xf32, #tpu.memory_space<vmem>>, vector<4x128xf32>
    %c1_71 = arith.constant 1 : index
    %c0_72 = arith.constant 0 : index
    %118 = tpu.strided_load %arg26[%c1_71, %c0_72] {strides = array<i32: 3, 1>} : memref<12x128xf32, #tpu.memory_space<vmem>>, vector<4x128xf32>
    %c2_73 = arith.constant 2 : index
    %c0_74 = arith.constant 0 : index
    %119 = tpu.strided_load %arg26[%c2_73, %c0_74] {strides = array<i32: 3, 1>} : memref<12x128xf32, #tpu.memory_space<vmem>>, vector<4x128xf32>
    %120 = arith.maximumf %117, %118 : vector<4x128xf32>
    %121 = arith.maximumf %120, %119 : vector<4x128xf32>
    %122 = vector.shape_cast %121 : vector<4x128xf32> to vector<2x2x128xf32>
    %cst_75 = arith.constant dense<0.000000e+00> : vector<2x128xf32>
    %123 = vector.multi_reduction <add>, %122, %cst_75 [1] : vector<2x2x128xf32> to vector<2x128xf32>
    %c0_76 = arith.constant 0 : index
    %c0_77 = arith.constant 0 : index
    %124 = vector.load %arg23[%c0_76, %c0_77] : memref<2x128xf32, #tpu.memory_space<vmem>>, vector<2x128xf32>
    %125 = arith.addf %124, %123 : vector<2x128xf32>
    %c0_78 = arith.constant 0 : index
    %c0_79 = arith.constant 0 : index
    %126 = vector.load %arg23[%c0_78, %c0_79] : memref<2x128xf32, #tpu.memory_space<vmem>>, vector<2x128xf32>
    tpu.vector_store %arg23[%c0_78, %c0_79], %125 {strides = array<i32>} : memref<2x128xf32, #tpu.memory_space<vmem>>, vector<2x128xf32>,
    %c0_i32_80 = arith.constant 0 : i32
    %127 = arith.cmpi eq, %arg1, %c0_i32_80 : i32
    %128 = arith.extui %127 : i1 to i32
    %c0_i32_81 = arith.constant 0 : i32
    %129 = arith.cmpi ne, %128, %c0_i32_81 : i32
    scf.if %129 {
      %c0_82 = arith.constant 0 : index
      %c0_83 = arith.constant 0 : index
      %130 = vector.load %arg23[%c0_82, %c0_83] : memref<2x128xf32, #tpu.memory_space<vmem>>, vector<2x128xf32>
      %cst_84 = arith.constant 5.000000e-01 : f32
      %131 = vector.broadcast %cst_84 : f32 to vector<2x128xf32>
      %132 = arith.mulf %130, %131 : vector<2x128xf32>
      %c0_85 = arith.constant 0 : index
      %c0_86 = arith.constant 0 : index
      %133 = vector.load %arg20[%c0_85, %c0_86] : memref<128x128xbf16, #tpu.memory_space<vmem>>, vector<128x128xbf16>
      %134 = arith.truncf %132 : vector<2x128xf32> to vector<2x128xbf16>
      %cst_87 = arith.constant dense<0.000000e+00> : vector<2x128xf32>
      %135 = tpu.matmul %134, %133, %cst_87 {dimension_numbers = #tpu.dot_dimension_numbers<[1], [0], [0], [1], [0, 0, 1, 1], [], []>} : vector<2x128xbf16>, vector<128x128xbf16>, vector<2x128xf32> -> vector<2x128xf32>
      %c0_88 = arith.constant 0 : index
      %c0_89 = arith.constant 0 : index
      %136 = vector.load %arg21[%c0_88, %c0_89] : memref<1x128xf32, #tpu.memory_space<vmem>>, vector<1x128xf32>
      %137 = vector.broadcast %136 : vector<1x128xf32> to vector<2x128xf32>
      %138 = arith.addf %135, %137 : vector<2x128xf32>
      %139 = vector.shape_cast %138 : vector<2x128xf32> to vector<1x2x128xf32>
      %c0_90 = arith.constant 0 : index
      %c0_91 = arith.constant 0 : index
      %c0_92 = arith.constant 0 : index
      %140 = vector.load %arg22[%c0_90, %c0_91, %c0_92] : memref<1x2x128xf32, #tpu.memory_space<vmem>>, vector<1x2x128xf32>
      tpu.vector_store %arg22[%c0_90, %c0_91, %c0_92], %139 {strides = array<i32>} : memref<1x2x128xf32, #tpu.memory_space<vmem>>, vector<1x2x128xf32>,
    } else {
    }
    return
  }
  func.func @transform_0(%arg0: i32, %arg1: i32) -> (i32, i32) {
    %c1_i32 = arith.constant 1 : i32
    %0 = arith.muli %arg0, %c1_i32 : i32
    %1 = arith.addi %0, %arg1 : i32
    %c0_i32 = arith.constant 0 : i32
    %c0_i32_0 = arith.constant 0 : i32
    return %1, %c0_i32 : i32, i32
  }
  func.func @transform_1(%arg0: i32, %arg1: i32) -> (i32, i32) {
    %c0_i32 = arith.constant 0 : i32
    %c0_i32_0 = arith.constant 0 : i32
    %c0_i32_1 = arith.constant 0 : i32
    return %c0_i32, %c0_i32_0 : i32, i32
  }
  func.func @transform_2(%arg0: i32, %arg1: i32) -> (i32, i32) {
    %c0_i32 = arith.constant 0 : i32
    %c0_i32_0 = arith.constant 0 : i32
    %c0_i32_1 = arith.constant 0 : i32
    return %c0_i32, %c0_i32_0 : i32, i32
  }
  func.func @transform_3(%arg0: i32, %arg1: i32) -> (i32, i32) {
    %c0_i32 = arith.constant 0 : i32
    %c0_i32_0 = arith.constant 0 : i32
    %c0_i32_1 = arith.constant 0 : i32
    return %c0_i32, %c0_i32_0 : i32, i32
  }
  func.func @transform_4(%arg0: i32, %arg1: i32) -> (i32, i32) {
    %c0_i32 = arith.constant 0 : i32
    %c0_i32_0 = arith.constant 0 : i32
    %c0_i32_1 = arith.constant 0 : i32
    return %c0_i32, %c0_i32_0 : i32, i32
  }
  func.func @transform_5(%arg0: i32, %arg1: i32) -> (i32, i32) {
    %c0_i32 = arith.constant 0 : i32
    %c0_i32_0 = arith.constant 0 : i32
    %c0_i32_1 = arith.constant 0 : i32
    return %c0_i32, %c0_i32_0 : i32, i32
  }
  func.func @transform_6(%arg0: i32, %arg1: i32) -> (i32, i32) {
    %c0_i32 = arith.constant 0 : i32
    %c0_i32_0 = arith.constant 0 : i32
    %c0_i32_1 = arith.constant 0 : i32
    return %c0_i32, %c0_i32_0 : i32, i32
  }
  func.func @transform_7(%arg0: i32, %arg1: i32) -> i32 {
    %c0_i32 = arith.constant 0 : i32
    %c0_i32_0 = arith.constant 0 : i32
    return %c0_i32 : i32
  }
  func.func @transform_8(%arg0: i32, %arg1: i32) -> (i32, i32) {
    %c0_i32 = arith.constant 0 : i32
    %c0_i32_0 = arith.constant 0 : i32
    %c0_i32_1 = arith.constant 0 : i32
    return %c0_i32, %c0_i32_0 : i32, i32
  }
  func.func @transform_9(%arg0: i32, %arg1: i32) -> (i32, i32) {
    %c0_i32 = arith.constant 0 : i32
    %c0_i32_0 = arith.constant 0 : i32
    %c0_i32_1 = arith.constant 0 : i32
    return %c0_i32, %c0_i32_0 : i32, i32
  }
  func.func @transform_10(%arg0: i32, %arg1: i32) -> (i32, i32) {
    %c0_i32 = arith.constant 0 : i32
    %c0_i32_0 = arith.constant 0 : i32
    %c0_i32_1 = arith.constant 0 : i32
    return %c0_i32, %c0_i32_0 : i32, i32
  }
  func.func @transform_11(%arg0: i32, %arg1: i32) -> (i32, i32) {
    %c0_i32 = arith.constant 0 : i32
    %c0_i32_0 = arith.constant 0 : i32
    %c0_i32_1 = arith.constant 0 : i32
    return %c0_i32, %c0_i32_0 : i32, i32
  }
  func.func @transform_12(%arg0: i32, %arg1: i32) -> i32 {
    %c0_i32 = arith.constant 0 : i32
    %c0_i32_0 = arith.constant 0 : i32
    return %c0_i32 : i32
  }
  func.func @transform_13(%arg0: i32, %arg1: i32) -> (i32, i32) {
    %c0_i32 = arith.constant 0 : i32
    %c0_i32_0 = arith.constant 0 : i32
    %c0_i32_1 = arith.constant 0 : i32
    return %c0_i32, %c0_i32_0 : i32, i32
  }
  func.func @transform_14(%arg0: i32, %arg1: i32) -> (i32, i32) {
    %c0_i32 = arith.constant 0 : i32
    %c0_i32_0 = arith.constant 0 : i32
    %c0_i32_1 = arith.constant 0 : i32
    return %c0_i32, %c0_i32_0 : i32, i32
  }
  func.func @transform_15(%arg0: i32, %arg1: i32) -> (i32, i32) {
    %c0_i32 = arith.constant 0 : i32
    %c0_i32_0 = arith.constant 0 : i32
    %c0_i32_1 = arith.constant 0 : i32
    return %c0_i32, %c0_i32_0 : i32, i32
  }
  func.func @transform_16(%arg0: i32, %arg1: i32) -> (i32, i32) {
    %c0_i32 = arith.constant 0 : i32
    %c0_i32_0 = arith.constant 0 : i32
    %c0_i32_1 = arith.constant 0 : i32
    return %c0_i32, %c0_i32_0 : i32, i32
  }
  func.func @transform_17(%arg0: i32, %arg1: i32) -> i32 {
    %c0_i32 = arith.constant 0 : i32
    %c0_i32_0 = arith.constant 0 : i32
    return %c0_i32 : i32
  }
  func.func @transform_18(%arg0: i32, %arg1: i32) -> (i32, i32) {
    %c0_i32 = arith.constant 0 : i32
    %c0_i32_0 = arith.constant 0 : i32
    %c0_i32_1 = arith.constant 0 : i32
    return %c0_i32, %c0_i32_0 : i32, i32
  }
  func.func @transform_19(%arg0: i32, %arg1: i32) -> (i32, i32) {
    %c0_i32 = arith.constant 0 : i32
    %c0_i32_0 = arith.constant 0 : i32
    %c0_i32_1 = arith.constant 0 : i32
    return %c0_i32, %c0_i32_0 : i32, i32
  }
  func.func @transform_20(%arg0: i32, %arg1: i32) -> (i32, i32, i32) {
    %c0_i32 = arith.constant 0 : i32
    %c0_i32_0 = arith.constant 0 : i32
    %c0_i32_1 = arith.constant 0 : i32
    return %arg0, %c0_i32, %c0_i32_0 : i32, i32, i32
  }
}

</mosaic_0001>

<llo_original>
// kernel: resnet4spex_forward_ntc.1
$region0: #{resnet4spex_forward_ntc.1}
  #allocation0 [shape = 'u32[]', space=smem, size = 0x4, offset = 0x4, fixed_abs, tag = 'smem constant byte address 0x4 - core index']
  #allocation1 [shape = 'u32[144,128]{1,0:T(1,128)}', space=vmem, size = 0x12000, scoped, tag = 'internal scratch']
  #allocation2 [shape = 'f32[2,128]{1,0:T(2,128)}', space=vmem, size = 0x400, scoped, tag = 'scratch operand']
  #allocation3 [shape = 'f32[108,64]{1,0:T(8,128)}', space=vmem, size = 0xe000, scoped, tag = 'scratch operand']
  #allocation4 [shape = 'f32[36,128]{1,0:T(8,128)}', space=vmem, size = 0x5000, scoped, tag = 'scratch operand']
  #allocation5 [shape = 'f32[12,128]{1,0:T(8,128)}', space=vmem, size = 0x2000, scoped, tag = 'scratch operand']
  %s0 = inlined_call_operand.vmem [shape: bf16[108,192], index: 0, kind: input, shape index: {}]
  %s1 = inlined_call_operand.vmem [shape: bf16[192,64], index: 1, kind: input, shape index: {}]
  %s2 = inlined_call_operand.vmem [shape: f32[1,64], index: 2, kind: input, shape index: {}]
  %s3 = inlined_call_operand.vmem [shape: bf16[64,64], index: 3, kind: input, shape index: {}]
  %s4 = inlined_call_operand.vmem [shape: f32[1,64], index: 4, kind: input, shape index: {}]
  %s5 = inlined_call_operand.vmem [shape: bf16[64,64], index: 5, kind: input, shape index: {}]
  %s6 = inlined_call_operand.vmem [shape: f32[1,64], index: 6, kind: input, shape index: {}]
  %s7 = inlined_call_operand.vmem [shape: f32[2], index: 7, kind: input, shape index: {}]
  %s8 = inlined_call_operand.vmem [shape: bf16[64,256], index: 8, kind: input, shape index: {}]
  %s9 = inlined_call_operand.vmem [shape: f32[1,128], index: 9, kind: input, shape index: {}]
  %s10 = inlined_call_operand.vmem [shape: bf16[128,128], index: 10, kind: input, shape index: {}]
  %s11 = inlined_call_operand.vmem [shape: f32[1,128], index: 11, kind: input, shape index: {}]
  %s12 = inlined_call_operand.vmem [shape: f32[2], index: 12, kind: input, shape index: {}]
  %s13 = inlined_call_operand.vmem [shape: bf16[128,128], index: 13, kind: input, shape index: {}]
  %s14 = inlined_call_operand.vmem [shape: f32[1,128], index: 14, kind: input, shape index: {}]
  %s15 = inlined_call_operand.vmem [shape: bf16[128,128], index: 15, kind: input, shape index: {}]
  %s16 = inlined_call_operand.vmem [shape: f32[1,128], index: 16, kind: input, shape index: {}]
  %s17 = inlined_call_operand.vmem [shape: f32[2], index: 17, kind: input, shape index: {}]
  %s18 = inlined_call_operand.vmem [shape: bf16[128,128], index: 18, kind: input, shape index: {}]
  %s19 = inlined_call_operand.vmem [shape: f32[1,128], index: 19, kind: input, shape index: {}]
  %s20 = inlined_call_operand.hbm [shape: f32[1,2,128], index: 20, kind: output, shape index: {}]
  %s21 = sld [smem:[#allocation0]]
  $region110: #{resnet4spex_forward_ntc.1} parent=0
    _
  %s23 = ssub.s32 1, %s21
  %s24 = scalar_select 0, %s23, %s21
  $region1: #{resnet4spex_forward_ntc.1} parent=0
    #allocation6 [shape = 'u8[512]{0}', space=smem, size = 0x200, scoped, tag = 'input window, operand 7, single buffered']
    #allocation7 [shape = 's32[1]{0}', space=sflag, size = 0x4, scoped, tag = 'scoped memory for resnet4spex_forward_ntc.1']
    #allocation8 [shape = 's32[1]{0}', space=sflag, size = 0x4, scoped, tag = 'scoped memory for resnet4spex_forward_ntc.1']
    #allocation9 [shape = 'u8[512]{0}', space=smem, size = 0x200, scoped, tag = 'input window, operand 12, single buffered']
    #allocation10 [shape = 's32[1]{0}', space=sflag, size = 0x4, scoped, tag = 'scoped memory for resnet4spex_forward_ntc.1']
    #allocation11 [shape = 'u8[512]{0}', space=smem, size = 0x200, scoped, tag = 'input window, operand 17, single buffered']
    #allocation12 [shape = 'u8[1024]{0}', space=vmem, size = 0x400, scoped, tag = 'output window, operand 0, single buffered']
    %25 = vsyncpa [#allocation8], 0
    %26 = vsyncpa [#allocation10], 0
    %27 = vsyncpa [#allocation7], 0
    // Predicated region
    $region2: #{resnet4spex_forward_ntc.1} parent=1 // pred_check
      _
    $region3: #{resnet4spex_forward_ntc.1} parent=1 // pred_check_branch
      %29 = sbr.rel (0) target = $region5
    $region4: #{resnet4spex_forward_ntc.1} parent=1 // pred_region
      %s30 = sadd.s32 0, 0
      %s31 = smul.u32 14, %s30
      %p32 = scmp.lt.s32.totalorder %s31, 13
      %s33 = scalar_select %p32, %s31, 13
      %s34 = smul.addr %s33, 2
      %s35 = smul.addr %s34, 4
      %s36 = scalar_lea.vmem %s0, %s35
      %s37 = sadd.s32 0, 0
      %s38 = smul.u32 14, %s37
    $region5: #{resnet4spex_forward_ntc.1} parent=1 // pred_fallthru
      _
    // Predicated region
    $region6: #{resnet4spex_forward_ntc.1} parent=1 // pred_check
      _
    $region7: #{resnet4spex_forward_ntc.1} parent=1 // pred_check_branch
      %40 = sbr.rel (0) target = $region9
    $region8: #{resnet4spex_forward_ntc.1} parent=1 // pred_region
      _
    $region9: #{resnet4spex_forward_ntc.1} parent=1 // pred_fallthru
      _
    // Predicated region
    $region10: #{resnet4spex_forward_ntc.1} parent=1 // pred_check
      _
    $region11: #{resnet4spex_forward_ntc.1} parent=1 // pred_check_branch
      %42 = sbr.rel (0) target = $region13
    $region12: #{resnet4spex_forward_ntc.1} parent=1 // pred_region
      _
    $region13: #{resnet4spex_forward_ntc.1} parent=1 // pred_fallthru
      _
    // Predicated region
    $region14: #{resnet4spex_forward_ntc.1} parent=1 // pred_check
      _
    $region15: #{resnet4spex_forward_ntc.1} parent=1 // pred_check_branch
      %44 = sbr.rel (0) target = $region17
    $region16: #{resnet4spex_forward_ntc.1} parent=1 // pred_region
      _
    $region17: #{resnet4spex_forward_ntc.1} parent=1 // pred_fallthru
      _
    // Predicated region
    $region18: #{resnet4spex_forward_ntc.1} parent=1 // pred_check
      _
    $region19: #{resnet4spex_forward_ntc.1} parent=1 // pred_check_branch
      %46 = sbr.rel (0) target = $region21
    $region20: #{resnet4spex_forward_ntc.1} parent=1 // pred_region
      _
    $region21: #{resnet4spex_forward_ntc.1} parent=1 // pred_fallthru
      _
    // Predicated region
    $region22: #{resnet4spex_forward_ntc.1} parent=1 // pred_check
      _
    $region23: #{resnet4spex_forward_ntc.1} parent=1 // pred_check_branch
      %48 = sbr.rel (0) target = $region25
    $region24: #{resnet4spex_forward_ntc.1} parent=1 // pred_region
      _
    $region25: #{resnet4spex_forward_ntc.1} parent=1 // pred_fallthru
      _
    // Predicated region
    $region26: #{resnet4spex_forward_ntc.1} parent=1 // pred_check
      _
    $region27: #{resnet4spex_forward_ntc.1} parent=1 // pred_check_branch
      %50 = sbr.rel (0) target = $region29
    $region28: #{resnet4spex_forward_ntc.1} parent=1 // pred_region
      _
    $region29: #{resnet4spex_forward_ntc.1} parent=1 // pred_fallthru
      _
    // Predicated region
    $region30: #{resnet4spex_forward_ntc.1} parent=1 // pred_check
      _
    $region31: #{resnet4spex_forward_ntc.1} parent=1 // pred_check_branch
      %52 = sbr.rel (0) target = $region33
    $region32: #{resnet4spex_forward_ntc.1} parent=1 // pred_region
      %s54 = ssub.s32 16, 16
      %55 = vsyncadd [#allocation8], %s54
      %s57 = sshll.u32 %s7, 4
      %s58 = int_to_ptr.vmem [resolvable:$true] %s57
      %60 = dma.vmem_to_smem %s58, 16, [#allocation6], [#allocation8]
    $region33: #{resnet4spex_forward_ntc.1} parent=1 // pred_fallthru
      _
    // Predicated region
    $region34: #{resnet4spex_forward_ntc.1} parent=1 // pred_check
      _
    $region35: #{resnet4spex_forward_ntc.1} parent=1 // pred_check_branch
      %62 = sbr.rel (0) target = $region37
    $region36: #{resnet4spex_forward_ntc.1} parent=1 // pred_region
      _
    $region37: #{resnet4spex_forward_ntc.1} parent=1 // pred_fallthru
      _
    // Predicated region
    $region38: #{resnet4spex_forward_ntc.1} parent=1 // pred_check
      _
    $region39: #{resnet4spex_forward_ntc.1} parent=1 // pred_check_branch
      %64 = sbr.rel (0) target = $region41
    $region40: #{resnet4spex_forward_ntc.1} parent=1 // pred_region
      _
    $region41: #{resnet4spex_forward_ntc.1} parent=1 // pred_fallthru
      _
    // Predicated region
    $region42: #{resnet4spex_forward_ntc.1} parent=1 // pred_check
      _
    $region43: #{resnet4spex_forward_ntc.1} parent=1 // pred_check_branch
      %66 = sbr.rel (0) target = $region45
    $region44: #{resnet4spex_forward_ntc.1} parent=1 // pred_region
      _
    $region45: #{resnet4spex_forward_ntc.1} parent=1 // pred_fallthru
      _
    // Predicated region
    $region46: #{resnet4spex_forward_ntc.1} parent=1 // pred_check
      _
    $region47: #{resnet4spex_forward_ntc.1} parent=1 // pred_check_branch
      %68 = sbr.rel (0) target = $region49
    $region48: #{resnet4spex_forward_ntc.1} parent=1 // pred_region
      _
    $region49: #{resnet4spex_forward_ntc.1} parent=1 // pred_fallthru
      _
    // Predicated region
    $region50: #{resnet4spex_forward_ntc.1} parent=1 // pred_check
      _
    $region51: #{resnet4spex_forward_ntc.1} parent=1 // pred_check_branch
      %70 = sbr.rel (0) target = $region53
    $region52: #{resnet4spex_forward_ntc.1} parent=1 // pred_region
      %s72 = ssub.s32 16, 16
      %73 = vsyncadd [#allocation10], %s72
      %s75 = sshll.u32 %s12, 4
      %s76 = int_to_ptr.vmem [resolvable:$true] %s75
      %78 = dma.vmem_to_smem %s76, 16, [#allocation9], [#allocation10]
    $region53: #{resnet4spex_forward_ntc.1} parent=1 // pred_fallthru
      _
    // Predicated region
    $region54: #{resnet4spex_forward_ntc.1} parent=1 // pred_check
      _
    $region55: #{resnet4spex_forward_ntc.1} parent=1 // pred_check_branch
      %80 = sbr.rel (0) target = $region57
    $region56: #{resnet4spex_forward_ntc.1} parent=1 // pred_region
      _
    $region57: #{resnet4spex_forward_ntc.1} parent=1 // pred_fallthru
      _
    // Predicated region
    $region58: #{resnet4spex_forward_ntc.1} parent=1 // pred_check
      _
    $region59: #{resnet4spex_forward_ntc.1} parent=1 // pred_check_branch
      %82 = sbr.rel (0) target = $region61
    $region60: #{resnet4spex_forward_ntc.1} parent=1 // pred_region
      _
    $region61: #{resnet4spex_forward_ntc.1} parent=1 // pred_fallthru
      _
    // Predicated region
    $region62: #{resnet4spex_forward_ntc.1} parent=1 // pred_check
      _
    $region63: #{resnet4spex_forward_ntc.1} parent=1 // pred_check_branch
      %84 = sbr.rel (0) target = $region65
    $region64: #{resnet4spex_forward_ntc.1} parent=1 // pred_region
      _
    $region65: #{resnet4spex_forward_ntc.1} parent=1 // pred_fallthru
      _
    // Predicated region
    $region66: #{resnet4spex_forward_ntc.1} parent=1 // pred_check
      _
    $region67: #{resnet4spex_forward_ntc.1} parent=1 // pred_check_branch
      %86 = sbr.rel (0) target = $region69
    $region68: #{resnet4spex_forward_ntc.1} parent=1 // pred_region
      _
    $region69: #{resnet4spex_forward_ntc.1} parent=1 // pred_fallthru
      _
    // Predicated region
    $region70: #{resnet4spex_forward_ntc.1} parent=1 // pred_check
      _
    $region71: #{resnet4spex_forward_ntc.1} parent=1 // pred_check_branch
      %88 = sbr.rel (0) target = $region73
    $region72: #{resnet4spex_forward_ntc.1} parent=1 // pred_region
      %s90 = ssub.s32 16, 16
      %91 = vsyncadd [#allocation10], %s90
      %s93 = sshll.u32 %s17, 4
      %s94 = int_to_ptr.vmem [resolvable:$true] %s93
      %96 = dma.vmem_to_smem %s94, 16, [#allocation11], [#allocation10]
    $region73: #{resnet4spex_forward_ntc.1} parent=1 // pred_fallthru
      _
    // Predicated region
    $region74: #{resnet4spex_forward_ntc.1} parent=1 // pred_check
      _
    $region75: #{resnet4spex_forward_ntc.1} parent=1 // pred_check_branch
      %98 = sbr.rel (0) target = $region77
    $region76: #{resnet4spex_forward_ntc.1} parent=1 // pred_region
      _
    $region77: #{resnet4spex_forward_ntc.1} parent=1 // pred_fallthru
      _
    // Predicated region
    $region78: #{resnet4spex_forward_ntc.1} parent=1 // pred_check
      _
    $region79: #{resnet4spex_forward_ntc.1} parent=1 // pred_check_branch
      %100 = sbr.rel (0) target = $region81
    $region80: #{resnet4spex_forward_ntc.1} parent=1 // pred_region
      _
    $region81: #{resnet4spex_forward_ntc.1} parent=1 // pred_fallthru
      _
    // Predicated region
    $region82: #{resnet4spex_forward_ntc.1} parent=1 // pred_check
      _
    $region83: #{resnet4spex_forward_ntc.1} parent=1 // pred_check_branch
      %102 = sbr.rel (0) target = $region85
    $region84: #{resnet4spex_forward_ntc.1} parent=1 // pred_region
      %103 = dma.done [#allocation8], 16
    $region85: #{resnet4spex_forward_ntc.1} parent=1 // pred_fallthru
      _
    // Predicated region
    $region86: #{resnet4spex_forward_ntc.1} parent=1 // pred_check
      _
    $region87: #{resnet4spex_forward_ntc.1} parent=1 // pred_check_branch
      %105 = sbr.rel (0) target = $region89
    $region88: #{resnet4spex_forward_ntc.1} parent=1 // pred_region
      %106 = dma.done [#allocation10], 16
    $region89: #{resnet4spex_forward_ntc.1} parent=1 // pred_fallthru
      _
    // Predicated region
    $region90: #{resnet4spex_forward_ntc.1} parent=1 // pred_check
      _
    $region91: #{resnet4spex_forward_ntc.1} parent=1 // pred_check_branch
      %108 = sbr.rel (0) target = $region93
    $region92: #{resnet4spex_forward_ntc.1} parent=1 // pred_region
      %109 = dma.done [#allocation10], 16
    $region93: #{resnet4spex_forward_ntc.1} parent=1 // pred_fallthru
      _
    %110 = sfence
    %s111 = sadd.s32 0, 0
    %s112 = smul.u32 14, %s111
    %p113 = scmp.lt.s32.totalorder %s112, 13
    %s114 = scalar_select %p113, %s112, 13
    %s115 = smul.addr %s114, 2
    %s116 = smul.addr %s115, 4
    %s117 = scalar_lea.vmem %s0, %s116
    %s118 = sadd.s32 0, 0
    %s119 = smul.u32 14, %s118
    %p120 = scmp.lt.s32.totalorder %s119, 13
    %s121 = scalar_select %p120, %s119, 13
    %s122 = smul.addr %s121, 2
    %s123 = smul.addr %s122, 4
    %s124 = scalar_lea.vmem %s0, %s123
    %s125 = sadd.s32 0, 0
    %s126 = smul.u32 14, %s125
    %p128 = scmp.eq.s32.totalorder 0, 0
    // Predicated region
    $region94: #{resnet4spex_forward_ntc.1} parent=1 // pred_check
      %p129 = pneg %p128
    $region95: #{resnet4spex_forward_ntc.1} parent=1 // pred_check_branch
      %131 = sbr.rel (%p129) target = $region97
    $region96: #{resnet4spex_forward_ntc.1} parent=1 // pred_region
      %132 = vst [vmem:[#allocation2] sm:$0x3] 0.0
    $region97: #{resnet4spex_forward_ntc.1} parent=1 // pred_fallthru
      _
    %s133 = sld [smem:[#allocation6]]
    %s134 = sld [smem:[#allocation6 + $0x1]]
    %s135 = sld [smem:[#allocation9]]
    %s136 = sld [smem:[#allocation9 + $0x1]]
    %s137 = sld [smem:[#allocation11]]
    %s138 = sld [smem:[#allocation11 + $0x1]]
    %v139 = vld [vmem:[%s124] sm:$0xff]
    %v140 = vld [vmem:[%s124 + $0x8] sm:$0xff]
    %v141 = vld [vmem:[%s124 + $0x10] sm:$0xff]
    %v142 = vld [vmem:[%s124 + $0x18] sm:$0xff]
    %v143 = vld [vmem:[%s124 + $0x20] sm:$0xff]
    %v144 = vld [vmem:[%s124 + $0x28] sm:$0xff]
    %v145 = vld [vmem:[%s124 + $0x30] sm:$0xff]
    %v146 = vld [vmem:[%s124 + $0x38] sm:$0xff]
    %v147 = vld [vmem:[%s124 + $0x40] sm:$0xff]
    %v148 = vld [vmem:[%s124 + $0x48] sm:$0xff]
    %v149 = vld [vmem:[%s124 + $0x50] sm:$0xff]
    %v150 = vld [vmem:[%s124 + $0x58] sm:$0xff]
    %v151 = vld [vmem:[%s124 + $0x60] sm:$0xff]
    %v152 = vld [vmem:[%s124 + $0x68] sm:$0x33]
    %v153 = vunpack.c.l.bf16 %v139
    %v154 = vunpack.c.h.bf16 %v139
    %v155 = vunpack.c.l.bf16 %v140
    %v156 = vunpack.c.h.bf16 %v140
    %v157 = vunpack.c.l.bf16 %v141
    %v158 = vunpack.c.h.bf16 %v141
    %v159 = vunpack.c.l.bf16 %v142
    %v160 = vunpack.c.h.bf16 %v142
    %v161 = vunpack.c.l.bf16 %v143
    %v162 = vunpack.c.h.bf16 %v143
    %v163 = vunpack.c.l.bf16 %v144
    %v164 = vunpack.c.h.bf16 %v144
    %v165 = vunpack.c.l.bf16 %v145
    %v166 = vunpack.c.h.bf16 %v145
    %v167 = vunpack.c.l.bf16 %v146
    %v168 = vunpack.c.h.bf16 %v146
    %v169 = vunpack.c.l.bf16 %v147
    %v170 = vunpack.c.h.bf16 %v147
    %v171 = vunpack.c.l.bf16 %v148
    %v172 = vunpack.c.h.bf16 %v148
    %v173 = vunpack.c.l.bf16 %v149
    %v174 = vunpack.c.h.bf16 %v149
    %v175 = vunpack.c.l.bf16 %v150
    %v176 = vunpack.c.h.bf16 %v150
    %v177 = vunpack.c.l.bf16 %v151
    %v178 = vunpack.c.h.bf16 %v151
    %v179 = vunpack.c.l.bf16 %v152
    %v180 = vunpack.c.h.bf16 %v152
    %vm181 = vcmask 523264
    %v182 = vsel %vm181, %v154, 0.0
    %v183 = vadd.f32 %v153, %v182
    %184 = vadd.xlane.f32.xlu0 %v183
    %v185 = vpop.xlane.xlu0 %184
    %v186 = vsel %vm181, %v156, 0.0
    %v187 = vadd.f32 %v155, %v186
    %188 = vadd.xlane.f32.xlu0 %v187
    %v189 = vpop.xlane.xlu0 %188
    %v190 = vsel %vm181, %v158, 0.0
    %v191 = vadd.f32 %v157, %v190
    %192 = vadd.xlane.f32.xlu0 %v191
    %v193 = vpop.xlane.xlu0 %192
    %v194 = vsel %vm181, %v160, 0.0
    %v195 = vadd.f32 %v159, %v194
    %196 = vadd.xlane.f32.xlu0 %v195
    %v197 = vpop.xlane.xlu0 %196
    %v198 = vsel %vm181, %v162, 0.0
    %v199 = vadd.f32 %v161, %v198
    %200 = vadd.xlane.f32.xlu0 %v199
    %v201 = vpop.xlane.xlu0 %200
    %v202 = vsel %vm181, %v164, 0.0
    %v203 = vadd.f32 %v163, %v202
    %204 = vadd.xlane.f32.xlu0 %v203
    %v205 = vpop.xlane.xlu0 %204
    %v206 = vsel %vm181, %v166, 0.0
    %v207 = vadd.f32 %v165, %v206
    %208 = vadd.xlane.f32.xlu0 %v207
    %v209 = vpop.xlane.xlu0 %208
    %v210 = vsel %vm181, %v168, 0.0
    %v211 = vadd.f32 %v167, %v210
    %212 = vadd.xlane.f32.xlu0 %v211
    %v213 = vpop.xlane.xlu0 %212
    %v214 = vsel %vm181, %v170, 0.0
    %v215 = vadd.f32 %v169, %v214
    %216 = vadd.xlane.f32.xlu0 %v215
    %v217 = vpop.xlane.xlu0 %216
    %v218 = vsel %vm181, %v172, 0.0
    %v219 = vadd.f32 %v171, %v218
    %220 = vadd.xlane.f32.xlu0 %v219
    %v221 = vpop.xlane.xlu0 %220
    %v222 = vsel %vm181, %v174, 0.0
    %v223 = vadd.f32 %v173, %v222
    %224 = vadd.xlane.f32.xlu0 %v223
    %v225 = vpop.xlane.xlu0 %224
    %v226 = vsel %vm181, %v176, 0.0
    %v227 = vadd.f32 %v175, %v226
    %228 = vadd.xlane.f32.xlu0 %v227
    %v229 = vpop.xlane.xlu0 %228
    %v230 = vsel %vm181, %v178, 0.0
    %v231 = vadd.f32 %v177, %v230
    %232 = vadd.xlane.f32.xlu0 %v231
    %v233 = vpop.xlane.xlu0 %232
    %vm234 = vcmask 1043456
    %v235 = vsel %vm234, %v179, 0.0
    %vm236 = vcmask 519168
    %v237 = vsel %vm236, %v180, 0.0
    %v238 = vadd.f32 %v235, %v237
    %239 = vadd.xlane.f32.xlu0 %v238
    %v240 = vpop.xlane.xlu0 %239
    %v241 = vrcp.pop 192.0
    %v242 = vmul.f32 %v185, %v241
    %v243 = vmul.f32 %v189, %v241
    %v244 = vmul.f32 %v193, %v241
    %v245 = vmul.f32 %v197, %v241
    %v246 = vmul.f32 %v201, %v241
    %v247 = vmul.f32 %v205, %v241
    %v248 = vmul.f32 %v209, %v241
    %v249 = vmul.f32 %v213, %v241
    %v250 = vmul.f32 %v217, %v241
    %v251 = vmul.f32 %v221, %v241
    %v252 = vmul.f32 %v225, %v241
    %v253 = vmul.f32 %v229, %v241
    %v254 = vmul.f32 %v233, %v241
    %v255 = vmul.f32 %v240, %v241
    %v256 = vsub.f32 %v153, %v242
    %v257 = vsub.f32 %v154, %v242
    %v258 = vsub.f32 %v155, %v243
    %v259 = vsub.f32 %v156, %v243
    %v260 = vsub.f32 %v157, %v244
    %v261 = vsub.f32 %v158, %v244
    %v262 = vsub.f32 %v159, %v245
    %v263 = vsub.f32 %v160, %v245
    %v264 = vsub.f32 %v161, %v246
    %v265 = vsub.f32 %v162, %v246
    %v266 = vsub.f32 %v163, %v247
    %v267 = vsub.f32 %v164, %v247
    %v268 = vsub.f32 %v165, %v248
    %v269 = vsub.f32 %v166, %v248
    %v270 = vsub.f32 %v167, %v249
    %v271 = vsub.f32 %v168, %v249
    %v272 = vsub.f32 %v169, %v250
    %v273 = vsub.f32 %v170, %v250
    %v274 = vsub.f32 %v171, %v251
    %v275 = vsub.f32 %v172, %v251
    %v276 = vsub.f32 %v173, %v252
    %v277 = vsub.f32 %v174, %v252
    %v278 = vsub.f32 %v175, %v253
    %v279 = vsub.f32 %v176, %v253
    %v280 = vsub.f32 %v177, %v254
    %v281 = vsub.f32 %v178, %v254
    %v282 = vsub.f32 %v179, %v255
    %v283 = vsub.f32 %v180, %v255
    %v284 = vmul.f32 %v256, %v256
    %v285 = vmul.f32 %v257, %v257
    %v286 = vmul.f32 %v258, %v258
    %v287 = vmul.f32 %v259, %v259
    %v288 = vmul.f32 %v260, %v260
    %v289 = vmul.f32 %v261, %v261
    %v290 = vmul.f32 %v262, %v262
    %v291 = vmul.f32 %v263, %v263
    %v292 = vmul.f32 %v264, %v264
    %v293 = vmul.f32 %v265, %v265
    %v294 = vmul.f32 %v266, %v266
    %v295 = vmul.f32 %v267, %v267
    %v296 = vmul.f32 %v268, %v268
    %v297 = vmul.f32 %v269, %v269
    %v298 = vmul.f32 %v270, %v270
    %v299 = vmul.f32 %v271, %v271
    %v300 = vmul.f32 %v272, %v272
    %v301 = vmul.f32 %v273, %v273
    %v302 = vmul.f32 %v274, %v274
    %v303 = vmul.f32 %v275, %v275
    %v304 = vmul.f32 %v276, %v276
    %v305 = vmul.f32 %v277, %v277
    %v306 = vmul.f32 %v278, %v278
    %v307 = vmul.f32 %v279, %v279
    %v308 = vmul.f32 %v280, %v280
    %v309 = vmul.f32 %v281, %v281
    %v310 = vmul.f32 %v282, %v282
    %v311 = vmul.f32 %v283, %v283
    %v312 = vsel %vm181, %v285, 0.0
    %v313 = vadd.f32 %v284, %v312
    %314 = vadd.xlane.f32.xlu0 %v313
    %v315 = vpop.xlane.xlu0 %314
    %v316 = vsel %vm181, %v287, 0.0
    %v317 = vadd.f32 %v286, %v316
    %318 = vadd.xlane.f32.xlu0 %v317
    %v319 = vpop.xlane.xlu0 %318
    %v320 = vsel %vm181, %v289, 0.0
    %v321 = vadd.f32 %v288, %v320
    %322 = vadd.xlane.f32.xlu0 %v321
    %v323 = vpop.xlane.xlu0 %322
    %v324 = vsel %vm181, %v291, 0.0
    %v325 = vadd.f32 %v290, %v324
    %326 = vadd.xlane.f32.xlu0 %v325
    %v327 = vpop.xlane.xlu0 %326
    %v328 = vsel %vm181, %v293, 0.0
    %v329 = vadd.f32 %v292, %v328
    %330 = vadd.xlane.f32.xlu0 %v329
    %v331 = vpop.xlane.xlu0 %330
    %v332 = vsel %vm181, %v295, 0.0
    %v333 = vadd.f32 %v294, %v332
    %334 = vadd.xlane.f32.xlu0 %v333
    %v335 = vpop.xlane.xlu0 %334
    %v336 = vsel %vm181, %v297, 0.0
    %v337 = vadd.f32 %v296, %v336
    %338 = vadd.xlane.f32.xlu0 %v337
    %v339 = vpop.xlane.xlu0 %338
    %v340 = vsel %vm181, %v299, 0.0
    %v341 = vadd.f32 %v298, %v340
    %342 = vadd.xlane.f32.xlu0 %v341
    %v343 = vpop.xlane.xlu0 %342
    %v344 = vsel %vm181, %v301, 0.0
    %v345 = vadd.f32 %v300, %v344
    %346 = vadd.xlane.f32.xlu0 %v345
    %v347 = vpop.xlane.xlu0 %346
    %v348 = vsel %vm181, %v303, 0.0
    %v349 = vadd.f32 %v302, %v348
    %350 = vadd.xlane.f32.xlu0 %v349
    %v351 = vpop.xlane.xlu0 %350
    %v352 = vsel %vm181, %v305, 0.0
    %v353 = vadd.f32 %v304, %v352
    %354 = vadd.xlane.f32.xlu0 %v353
    %v355 = vpop.xlane.xlu0 %354
    %v356 = vsel %vm181, %v307, 0.0
    %v357 = vadd.f32 %v306, %v356
    %358 = vadd.xlane.f32.xlu0 %v357
    %v359 = vpop.xlane.xlu0 %358
    %v360 = vsel %vm181, %v309, 0.0
    %v361 = vadd.f32 %v308, %v360
    %362 = vadd.xlane.f32.xlu0 %v361
    %v363 = vpop.xlane.xlu0 %362
    %v364 = vsel %vm234, %v310, 0.0
    %v365 = vsel %vm236, %v311, 0.0
    %v366 = vadd.f32 %v364, %v365
    %367 = vadd.xlane.f32.xlu0 %v366
    %v368 = vpop.xlane.xlu0 %367
    %v369 = vmul.f32 %v315, %v241
    %v370 = vmul.f32 %v319, %v241
    %v371 = vmul.f32 %v323, %v241
    %v372 = vmul.f32 %v327, %v241
    %v373 = vmul.f32 %v331, %v241
    %v374 = vmul.f32 %v335, %v241
    %v375 = vmul.f32 %v339, %v241
    %v376 = vmul.f32 %v343, %v241
    %v377 = vmul.f32 %v347, %v241
    %v378 = vmul.f32 %v351, %v241
    %v379 = vmul.f32 %v355, %v241
    %v380 = vmul.f32 %v359, %v241
    %v381 = vmul.f32 %v363, %v241
    %v382 = vmul.f32 %v368, %v241
    %v383 = vadd.f32 %v369, 1e-05
    %v384 = vadd.f32 %v370, 1e-05
    %v385 = vadd.f32 %v371, 1e-05
    %v386 = vadd.f32 %v372, 1e-05
    %v387 = vadd.f32 %v373, 1e-05
    %v388 = vadd.f32 %v374, 1e-05
    %v389 = vadd.f32 %v375, 1e-05
    %v390 = vadd.f32 %v376, 1e-05
    %v391 = vadd.f32 %v377, 1e-05
    %v392 = vadd.f32 %v378, 1e-05
    %v393 = vadd.f32 %v379, 1e-05
    %v394 = vadd.f32 %v380, 1e-05
    %v395 = vadd.f32 %v381, 1e-05
    %v396 = vadd.f32 %v382, 1e-05
    %v397 = vrsqrt.pop %v383
    %v398 = vrsqrt.pop %v384
    %v399 = vrsqrt.pop %v385
    %v400 = vrsqrt.pop %v386
    %v401 = vrsqrt.pop %v387
    %v402 = vrsqrt.pop %v388
    %v403 = vrsqrt.pop %v389
    %v404 = vrsqrt.pop %v390
    %v405 = vrsqrt.pop %v391
    %v406 = vrsqrt.pop %v392
    %v407 = vrsqrt.pop %v393
    %v408 = vrsqrt.pop %v394
    %v409 = vrsqrt.pop %v395
    %v410 = vrsqrt.pop %v396
    %v411 = vmul.f32 %v256, %v397
    %v412 = vmul.f32 %v257, %v397
    %v413 = vmul.f32 %v258, %v398
    %v414 = vmul.f32 %v259, %v398
    %v415 = vmul.f32 %v260, %v399
    %v416 = vmul.f32 %v261, %v399
    %v417 = vmul.f32 %v262, %v400
    %v418 = vmul.f32 %v263, %v400
    %v419 = vmul.f32 %v264, %v401
    %v420 = vmul.f32 %v265, %v401
    %v421 = vmul.f32 %v266, %v402
    %v422 = vmul.f32 %v267, %v402
    %v423 = vmul.f32 %v268, %v403
    %v424 = vmul.f32 %v269, %v403
    %v425 = vmul.f32 %v270, %v404
    %v426 = vmul.f32 %v271, %v404
    %v427 = vmul.f32 %v272, %v405
    %v428 = vmul.f32 %v273, %v405
    %v429 = vmul.f32 %v274, %v406
    %v430 = vmul.f32 %v275, %v406
    %v431 = vmul.f32 %v276, %v407
    %v432 = vmul.f32 %v277, %v407
    %v433 = vmul.f32 %v278, %v408
    %v434 = vmul.f32 %v279, %v408
    %v435 = vmul.f32 %v280, %v409
    %v436 = vmul.f32 %v281, %v409
    %v437 = vmul.f32 %v282, %v410
    %v438 = vmul.f32 %v283, %v410
    %v439 = vld [vmem:[%s1] sm:$0xf]
    %v440 = vld [vmem:[%s1 + $0x4] sm:$0xf]
    %v441 = vld [vmem:[%s1 + $0x8] sm:$0xf]
    %v442 = vld [vmem:[%s1 + $0xc] sm:$0xf]
    %v443 = vld [vmem:[%s1 + $0x10] sm:$0xf]
    %v444 = vld [vmem:[%s1 + $0x14] sm:$0xf]
    %v445 = vld [vmem:[%s1 + $0x18] sm:$0xf]
    %v446 = vld [vmem:[%s1 + $0x1c] sm:$0xf]
    %v447 = vld [vmem:[%s1 + $0x20] sm:$0xf]
    %v448 = vld [vmem:[%s1 + $0x24] sm:$0xf]
    %v449 = vld [vmem:[%s1 + $0x28] sm:$0xf]
    %v450 = vld [vmem:[%s1 + $0x2c] sm:$0xf]
    %v451 = vld [vmem:[%s1 + $0x30] sm:$0xf]
    %v452 = vld [vmem:[%s1 + $0x34] sm:$0xf]
    %v453 = vld [vmem:[%s1 + $0x38] sm:$0xf]
    %v454 = vld [vmem:[%s1 + $0x3c] sm:$0xf]
    %v455 = vld [vmem:[%s1 + $0x40] sm:$0xf]
    %v456 = vld [vmem:[%s1 + $0x44] sm:$0xf]
    %v457 = vld [vmem:[%s1 + $0x48] sm:$0xf]
    %v458 = vld [vmem:[%s1 + $0x4c] sm:$0xf]
    %v459 = vld [vmem:[%s1 + $0x50] sm:$0xf]
    %v460 = vld [vmem:[%s1 + $0x54] sm:$0xf]
    %v461 = vld [vmem:[%s1 + $0x58] sm:$0xf]
    %v462 = vld [vmem:[%s1 + $0x5c] sm:$0xf]
    %v463 = vpack.c.bf16 %v413, %v411
    %v464 = vpack.c.bf16 %v414, %v412
    %v465 = vpack.c.bf16 %v417, %v415
    %v466 = vpack.c.bf16 %v418, %v416
    %v467 = vpack.c.bf16 %v421, %v419
    %v468 = vpack.c.bf16 %v422, %v420
    %v469 = vpack.c.bf16 %v425, %v423
    %v470 = vpack.c.bf16 %v426, %v424
    %v471 = vpack.c.bf16 %v429, %v427
    %v472 = vpack.c.bf16 %v430, %v428
    %v473 = vpack.c.bf16 %v433, %v431
    %v474 = vpack.c.bf16 %v434, %v432
    %v475 = vpack.c.bf16 %v437, %v435
    %v476 = vpack.c.bf16 %v438, %v436
    %v477 = vld [vmem:[%s2] sm:$0x1]
    %v479 = vlaneseq
    %v480 = vshrl.u32 %v479, 7
    %v481 = vsub.s32 0, %v480
    %v482 = vrot.slane %v477, %v481
    %v508 = vunpack.c.l.b16 %v439
    %v509 = vunpack.c.l.b16 %v440
    %v510 = vunpack.c.l.b16 %v441
    %v511 = vunpack.c.l.b16 %v442
    %v512 = vunpack.c.l.b16 %v443
    %v513 = vunpack.c.l.b16 %v444
    %v514 = vunpack.c.l.b16 %v445
    %v515 = vunpack.c.l.b16 %v446
    %v516 = vunpack.c.l.b16 %v447
    %v517 = vunpack.c.l.b16 %v448
    %v518 = vunpack.c.l.b16 %v449
    %v519 = vunpack.c.l.b16 %v450
    %v520 = vunpack.c.l.b16 %v451
    %v521 = vunpack.c.l.b16 %v452
    %v522 = vunpack.c.l.b16 %v453
    %v523 = vunpack.c.l.b16 %v454
    %v524 = vunpack.c.l.b16 %v455
    %v525 = vunpack.c.l.b16 %v456
    %v526 = vunpack.c.l.b16 %v457
    %v527 = vunpack.c.l.b16 %v458
    %v528 = vunpack.c.l.b16 %v459
    %v529 = vunpack.c.l.b16 %v460
    %v530 = vunpack.c.l.b16 %v461
    %v531 = vunpack.c.l.b16 %v462
    %v532 = vpack.c.b16 %v509, %v508
    %v533 = vpack.c.b16 %v511, %v510
    %v534 = vpack.c.b16 %v513, %v512
    %v535 = vpack.c.b16 %v515, %v514
    %v536 = vpack.c.b16 %v517, %v516
    %v537 = vpack.c.b16 %v519, %v518
    %v538 = vpack.c.b16 %v521, %v520
    %v539 = vpack.c.b16 %v523, %v522
    %v540 = vpack.c.b16 %v525, %v524
    %v541 = vpack.c.b16 %v527, %v526
    %v542 = vpack.c.b16 %v529, %v528
    %v543 = vpack.c.b16 %v531, %v530
    %v557 = vsel %vm181, %v464, 0
    %v560 = vsel %vm181, %v466, 0
    %v563 = vsel %vm181, %v468, 0
    %v566 = vsel %vm181, %v470, 0
    %v569 = vsel %vm181, %v472, 0
    %v572 = vsel %vm181, %v474, 0
    %v575 = vsel %vm181, %v476, 0
    %577 = vmatprep.subr.bf16.mxu0 0
    %578 = vmatpush1.bf16.msra.mxu0 %v532
    %579 = vmatprep.subr.bf16.mxu0 0
    %580 = vmatpush1.bf16.msra.mxu0 %v533
    %581 = vmatprep.subr.bf16.mxu0 0
    %582 = vmatpush1.bf16.msra.mxu0 %v534
    %583 = vmatprep.subr.bf16.mxu0 0
    %584 = vmatpush1.bf16.msra.mxu0 %v535
    %585 = vmatprep.subr.bf16.mxu0 0
    %586 = vmatpush1.bf16.msra.mxu0 %v536
    %587 = vmatprep.subr.bf16.mxu0 0
    %588 = vmatpush1.bf16.msra.mxu0 %v537
    %589 = vmatprep.subr.bf16.mxu0 0
    %590 = vmatpush1.bf16.msra.mxu0 %v538
    %591 = vmatprep.subr.bf16.mxu0 0
    %592 = vmatpush1.bf16.msra.mxu0 %v539
    %593 = vmatprep.subr.bf16.mxu0 0
    %594 = vmatpush1.bf16.msra.mxu0 %v540
    %595 = vmatprep.subr.bf16.mxu0 0
    %596 = vmatpush1.bf16.msra.mxu0 %v541
    %597 = vmatprep.subr.bf16.mxu0 0
    %598 = vmatpush1.bf16.msra.mxu0 %v542
    %599 = vmatprep.subr.bf16.mxu0 0
    %600 = vmatpush1.bf16.msra.mxu0 %v543
    %601 = vmatprep.subr.bf16.mxu0 0
    %602 = vmatpush1.bf16.msra.mxu0 0
    %603 = vmatprep.subr.bf16.mxu0 0
    %604 = vmatpush1.bf16.msra.mxu0 0
    %605 = vmatprep.subr.bf16.mxu0 0
    %606 = vmatpush1.bf16.msra.mxu0 0
    %607 = vmatprep.subr.bf16.mxu0 0
    %608 = vmatpush1.bf16.msra.mxu0 0
    %609 = vmatprep.mubr.bf16.mxu0 %v557
    %610 = vmatmul.mubr.bf16.gmra.mrb[0].mxu0 %v463
    %v611 = vpop.f32.mrb[0].mxu0
    %v612 = vadd.f32 %v482, %v611
    %v613 = vpop.f32.mrb[0].mxu0
    %v614 = vpop.f32.mrb[0].mxu0
    %v615 = vadd.f32 %v482, %v614
    %v616 = vpop.f32.mrb[0].mxu0
    %617 = vmatprep.mubr.bf16.mxu0 %v560
    %618 = vmatmul.mubr.bf16.gmra.mrb[0].mxu0 %v465
    %v619 = vpop.f32.mrb[0].mxu0
    %v620 = vadd.f32 %v482, %v619
    %v621 = vpop.f32.mrb[0].mxu0
    %v622 = vpop.f32.mrb[0].mxu0
    %v623 = vadd.f32 %v482, %v622
    %v624 = vpop.f32.mrb[0].mxu0
    %625 = vmatprep.mubr.bf16.mxu0 %v563
    %626 = vmatmul.mubr.bf16.gmra.mrb[0].mxu0 %v467
    %v627 = vpop.f32.mrb[0].mxu0
    %v628 = vadd.f32 %v482, %v627
    %v629 = vpop.f32.mrb[0].mxu0
    %v630 = vpop.f32.mrb[0].mxu0
    %v631 = vadd.f32 %v482, %v630
    %v632 = vpop.f32.mrb[0].mxu0
    %633 = vmatprep.mubr.bf16.mxu0 %v566
    %634 = vmatmul.mubr.bf16.gmra.mrb[0].mxu0 %v469
    %v635 = vpop.f32.mrb[0].mxu0
    %v636 = vadd.f32 %v482, %v635
    %v637 = vpop.f32.mrb[0].mxu0
    %v638 = vpop.f32.mrb[0].mxu0
    %v639 = vadd.f32 %v482, %v638
    %v640 = vpop.f32.mrb[0].mxu0
    %641 = vmatprep.mubr.bf16.mxu0 %v569
    %642 = vmatmul.mubr.bf16.gmra.mrb[0].mxu0 %v471
    %v643 = vpop.f32.mrb[0].mxu0
    %v644 = vadd.f32 %v482, %v643
    %v645 = vpop.f32.mrb[0].mxu0
    %v646 = vpop.f32.mrb[0].mxu0
    %v647 = vadd.f32 %v482, %v646
    %v648 = vpop.f32.mrb[0].mxu0
    %649 = vmatprep.mubr.bf16.mxu0 %v572
    %650 = vmatmul.mubr.bf16.gmra.mrb[0].mxu0 %v473
    %v651 = vpop.f32.mrb[0].mxu0
    %v652 = vadd.f32 %v482, %v651
    %v653 = vpop.f32.mrb[0].mxu0
    %v654 = vpop.f32.mrb[0].mxu0
    %v655 = vadd.f32 %v482, %v654
    %v656 = vpop.f32.mrb[0].mxu0
    %657 = vmatprep.mubr.bf16.mxu0 %v575
    %658 = vmatmul.mubr.bf16.gmra.mrb[0].mxu0 %v475
    %v659 = vpop.f32.mrb[0].mxu0
    %v660 = vadd.f32 %v482, %v659
    %v661 = vpop.f32.mrb[0].mxu0
    %v662 = vpop.f32.mrb[0].mxu0
    %v663 = vadd.f32 %v482, %v662
    %v664 = vpop.f32.mrb[0].mxu0
    %665 = vdwg.mxu0
    %v666 = vld [vmem:[%s3] sm:$0xf]
    %v667 = vld [vmem:[%s3 + $0x4] sm:$0xf]
    %v668 = vld [vmem:[%s3 + $0x8] sm:$0xf]
    %v669 = vld [vmem:[%s3 + $0xc] sm:$0xf]
    %v670 = vld [vmem:[%s3 + $0x10] sm:$0xf]
    %v671 = vld [vmem:[%s3 + $0x14] sm:$0xf]
    %v672 = vld [vmem:[%s3 + $0x18] sm:$0xf]
    %v673 = vld [vmem:[%s3 + $0x1c] sm:$0xf]
    %v674 = vpack.c.bf16 %v615, %v612
    %v675 = vpack.c.bf16 %v623, %v620
    %v676 = vpack.c.bf16 %v631, %v628
    %v677 = vpack.c.bf16 %v639, %v636
    %v678 = vpack.c.bf16 %v647, %v644
    %v679 = vpack.c.bf16 %v655, %v652
    %v680 = vpack.c.bf16 %v663, %v660
    %v681 = vld [vmem:[%s4] sm:$0x1]
    %v683 = vlaneseq
    %v684 = vshrl.u32 %v683, 7
    %v685 = vsub.s32 0, %v684
    %v686 = vrot.slane %v681, %v685
    %v696 = vunpack.c.l.b16 %v666
    %v697 = vunpack.c.l.b16 %v667
    %v698 = vunpack.c.l.b16 %v668
    %v699 = vunpack.c.l.b16 %v669
    %v700 = vunpack.c.l.b16 %v670
    %v701 = vunpack.c.l.b16 %v671
    %v702 = vunpack.c.l.b16 %v672
    %v703 = vunpack.c.l.b16 %v673
    %v704 = vpack.c.b16 %v697, %v696
    %v705 = vpack.c.b16 %v699, %v698
    %v706 = vpack.c.b16 %v701, %v700
    %v707 = vpack.c.b16 %v703, %v702
    %v713 = vsel %vm181, %v674, 0
    %v716 = vsel %vm181, %v675, 0
    %v719 = vsel %vm181, %v676, 0
    %v722 = vsel %vm181, %v677, 0
    %v725 = vsel %vm181, %v678, 0
    %v728 = vsel %vm181, %v679, 0
    %v731 = vsel %vm181, %v680, 0
    %733 = vmatprep.subr.bf16.mxu0 0
    %734 = vmatpush1.bf16.msra.mxu0 %v704
    %735 = vmatprep.subr.bf16.mxu0 0
    %736 = vmatpush1.bf16.msra.mxu0 %v705
    %737 = vmatprep.subr.bf16.mxu0 0
    %738 = vmatpush1.bf16.msra.mxu0 %v706
    %739 = vmatprep.subr.bf16.mxu0 0
    %740 = vmatpush1.bf16.msra.mxu0 %v707
    %741 = vmatprep.subr.bf16.mxu0 0
    %742 = vmatpush1.bf16.msra.mxu0 0
    %743 = vmatprep.subr.bf16.mxu0 0
    %744 = vmatpush1.bf16.msra.mxu0 0
    %745 = vmatprep.subr.bf16.mxu0 0
    %746 = vmatpush1.bf16.msra.mxu0 0
    %747 = vmatprep.subr.bf16.mxu0 0
    %748 = vmatpush1.bf16.msra.mxu0 0
    %749 = vmatprep.subr.bf16.mxu0 0
    %750 = vmatpush1.bf16.msra.mxu0 0
    %751 = vmatprep.subr.bf16.mxu0 0
    %752 = vmatpush1.bf16.msra.mxu0 0
    %753 = vmatprep.subr.bf16.mxu0 0
    %754 = vmatpush1.bf16.msra.mxu0 0
    %755 = vmatprep.subr.bf16.mxu0 0
    %756 = vmatpush1.bf16.msra.mxu0 0
    %757 = vmatprep.subr.bf16.mxu0 0
    %758 = vmatpush1.bf16.msra.mxu0 0
    %759 = vmatprep.subr.bf16.mxu0 0
    %760 = vmatpush1.bf16.msra.mxu0 0
    %761 = vmatprep.subr.bf16.mxu0 0
    %762 = vmatpush1.bf16.msra.mxu0 0
    %763 = vmatprep.subr.bf16.mxu0 0
    %764 = vmatpush1.bf16.msra.mxu0 0
    %765 = vmatprep.mubr.bf16.mxu0 0
    %766 = vmatmul.mubr.bf16.gmra.mrb[0].mxu0 %v713
    %v767 = vpop.f32.mrb[0].mxu0
    %v768 = vadd.f32 %v686, %v767
    %v769 = vpop.f32.mrb[0].mxu0
    %v770 = vpop.f32.mrb[0].mxu0
    %v771 = vadd.f32 %v686, %v770
    %v772 = vpop.f32.mrb[0].mxu0
    %773 = vmatprep.mubr.bf16.mxu0 0
    %774 = vmatmul.mubr.bf16.gmra.mrb[0].mxu0 %v716
    %v775 = vpop.f32.mrb[0].mxu0
    %v776 = vadd.f32 %v686, %v775
    %v777 = vpop.f32.mrb[0].mxu0
    %v778 = vpop.f32.mrb[0].mxu0
    %v779 = vadd.f32 %v686, %v778
    %v780 = vpop.f32.mrb[0].mxu0
    %781 = vmatprep.mubr.bf16.mxu0 0
    %782 = vmatmul.mubr.bf16.gmra.mrb[0].mxu0 %v719
    %v783 = vpop.f32.mrb[0].mxu0
    %v784 = vadd.f32 %v686, %v783
    %v785 = vpop.f32.mrb[0].mxu0
    %v786 = vpop.f32.mrb[0].mxu0
    %v787 = vadd.f32 %v686, %v786
    %v788 = vpop.f32.mrb[0].mxu0
    %789 = vmatprep.mubr.bf16.mxu0 0
    %790 = vmatmul.mubr.bf16.gmra.mrb[0].mxu0 %v722
    %v791 = vpop.f32.mrb[0].mxu0
    %v792 = vadd.f32 %v686, %v791
    %v793 = vpop.f32.mrb[0].mxu0
    %v794 = vpop.f32.mrb[0].mxu0
    %v795 = vadd.f32 %v686, %v794
    %v796 = vpop.f32.mrb[0].mxu0
    %797 = vmatprep.mubr.bf16.mxu0 0
    %798 = vmatmul.mubr.bf16.gmra.mrb[0].mxu0 %v725
    %v799 = vpop.f32.mrb[0].mxu0
    %v800 = vadd.f32 %v686, %v799
    %v801 = vpop.f32.mrb[0].mxu0
    %v802 = vpop.f32.mrb[0].mxu0
    %v803 = vadd.f32 %v686, %v802
    %v804 = vpop.f32.mrb[0].mxu0
    %805 = vmatprep.mubr.bf16.mxu0 0
    %806 = vmatmul.mubr.bf16.gmra.mrb[0].mxu0 %v728
    %v807 = vpop.f32.mrb[0].mxu0
    %v808 = vadd.f32 %v686, %v807
    %v809 = vpop.f32.mrb[0].mxu0
    %v810 = vpop.f32.mrb[0].mxu0
    %v811 = vadd.f32 %v686, %v810
    %v812 = vpop.f32.mrb[0].mxu0
    %813 = vmatprep.mubr.bf16.mxu0 0
    %814 = vmatmul.mubr.bf16.gmra.mrb[0].mxu0 %v731
    %v815 = vpop.f32.mrb[0].mxu0
    %v816 = vadd.f32 %v686, %v815
    %v817 = vpop.f32.mrb[0].mxu0
    %v818 = vpop.f32.mrb[0].mxu0
    %v819 = vadd.f32 %v686, %v818
    %v820 = vpop.f32.mrb[0].mxu0
    %821 = vdwg.mxu0
    %vm822 = vcmp.ge.f32.partialorder %v768, 0.0
    %vm823 = vcmp.ge.f32.partialorder %v771, 0.0
    %vm824 = vcmp.ge.f32.partialorder %v776, 0.0
    %vm825 = vcmp.ge.f32.partialorder %v779, 0.0
    %vm826 = vcmp.ge.f32.partialorder %v784, 0.0
    %vm827 = vcmp.ge.f32.partialorder %v787, 0.0
    %vm828 = vcmp.ge.f32.partialorder %v792, 0.0
    %vm829 = vcmp.ge.f32.partialorder %v795, 0.0
    %vm830 = vcmp.ge.f32.partialorder %v800, 0.0
    %vm831 = vcmp.ge.f32.partialorder %v803, 0.0
    %vm832 = vcmp.ge.f32.partialorder %v808, 0.0
    %vm833 = vcmp.ge.f32.partialorder %v811, 0.0
    %vm834 = vcmp.ge.f32.partialorder %v816, 0.0
    %vm835 = vcmp.ge.f32.partialorder %v819, 0.0
    %v836 = vstv %s133
    %v837 = vmul.f32 %v836, %v768
    %v838 = vmul.f32 %v836, %v771
    %v839 = vmul.f32 %v836, %v776
    %v840 = vmul.f32 %v836, %v779
    %v841 = vmul.f32 %v836, %v784
    %v842 = vmul.f32 %v836, %v787
    %v843 = vmul.f32 %v836, %v792
    %v844 = vmul.f32 %v836, %v795
    %v845 = vmul.f32 %v836, %v800
    %v846 = vmul.f32 %v836, %v803
    %v847 = vmul.f32 %v836, %v808
    %v848 = vmul.f32 %v836, %v811
    %v849 = vmul.f32 %v836, %v816
    %v850 = vmul.f32 %v836, %v819
    %v851 = vsel %vm822, %v768, %v837
    %v852 = vsel %vm823, %v771, %v838
    %v853 = vsel %vm824, %v776, %v839
    %v854 = vsel %vm825, %v779, %v840
    %v855 = vsel %vm826, %v784, %v841
    %v856 = vsel %vm827, %v787, %v842
    %v857 = vsel %vm828, %v792, %v843
    %v858 = vsel %vm829, %v795, %v844
    %v859 = vsel %vm830, %v800, %v845
    %v860 = vsel %vm831, %v803, %v846
    %v861 = vsel %vm832, %v808, %v847
    %v862 = vsel %vm833, %v811, %v848
    %v863 = vsel %vm834, %v816, %v849
    %v864 = vsel %vm835, %v819, %v850
    %v865 = vld [vmem:[%s5] sm:$0xf]
    %v866 = vld [vmem:[%s5 + $0x4] sm:$0xf]
    %v867 = vld [vmem:[%s5 + $0x8] sm:$0xf]
    %v868 = vld [vmem:[%s5 + $0xc] sm:$0xf]
    %v869 = vld [vmem:[%s5 + $0x10] sm:$0xf]
    %v870 = vld [vmem:[%s5 + $0x14] sm:$0xf]
    %v871 = vld [vmem:[%s5 + $0x18] sm:$0xf]
    %v872 = vld [vmem:[%s5 + $0x1c] sm:$0xf]
    %v873 = vpack.c.bf16 %v852, %v851
    %v874 = vpack.c.bf16 %v854, %v853
    %v875 = vpack.c.bf16 %v856, %v855
    %v876 = vpack.c.bf16 %v858, %v857
    %v877 = vpack.c.bf16 %v860, %v859
    %v878 = vpack.c.bf16 %v862, %v861
    %v879 = vpack.c.bf16 %v864, %v863
    %v880 = vld [vmem:[%s6] sm:$0x1]
    %v882 = vlaneseq
    %v883 = vshrl.u32 %v882, 7
    %v884 = vsub.s32 0, %v883
    %v885 = vrot.slane %v880, %v884
    %v895 = vunpack.c.l.b16 %v865
    %v896 = vunpack.c.l.b16 %v866
    %v897 = vunpack.c.l.b16 %v867
    %v898 = vunpack.c.l.b16 %v868
    %v899 = vunpack.c.l.b16 %v869
    %v900 = vunpack.c.l.b16 %v870
    %v901 = vunpack.c.l.b16 %v871
    %v902 = vunpack.c.l.b16 %v872
    %v903 = vpack.c.b16 %v896, %v895
    %v904 = vpack.c.b16 %v898, %v897
    %v905 = vpack.c.b16 %v900, %v899
    %v906 = vpack.c.b16 %v902, %v901
    %v912 = vsel %vm181, %v873, 0
    %v915 = vsel %vm181, %v874, 0
    %v918 = vsel %vm181, %v875, 0
    %v921 = vsel %vm181, %v876, 0
    %v924 = vsel %vm181, %v877, 0
    %v927 = vsel %vm181, %v878, 0
    %v930 = vsel %vm181, %v879, 0
    %932 = vmatprep.subr.bf16.mxu0 0
    %933 = vmatpush1.bf16.msra.mxu0 %v903
    %934 = vmatprep.subr.bf16.mxu0 0
    %935 = vmatpush1.bf16.msra.mxu0 %v904
    %936 = vmatprep.subr.bf16.mxu0 0
    %937 = vmatpush1.bf16.msra.mxu0 %v905
    %938 = vmatprep.subr.bf16.mxu0 0
    %939 = vmatpush1.bf16.msra.mxu0 %v906
    %940 = vmatprep.subr.bf16.mxu0 0
    %941 = vmatpush1.bf16.msra.mxu0 0
    %942 = vmatprep.subr.bf16.mxu0 0
    %943 = vmatpush1.bf16.msra.mxu0 0
    %944 = vmatprep.subr.bf16.mxu0 0
    %945 = vmatpush1.bf16.msra.mxu0 0
    %946 = vmatprep.subr.bf16.mxu0 0
    %947 = vmatpush1.bf16.msra.mxu0 0
    %948 = vmatprep.subr.bf16.mxu0 0
    %949 = vmatpush1.bf16.msra.mxu0 0
    %950 = vmatprep.subr.bf16.mxu0 0
    %951 = vmatpush1.bf16.msra.mxu0 0
    %952 = vmatprep.subr.bf16.mxu0 0
    %953 = vmatpush1.bf16.msra.mxu0 0
    %954 = vmatprep.subr.bf16.mxu0 0
    %955 = vmatpush1.bf16.msra.mxu0 0
    %956 = vmatprep.subr.bf16.mxu0 0
    %957 = vmatpush1.bf16.msra.mxu0 0
    %958 = vmatprep.subr.bf16.mxu0 0
    %959 = vmatpush1.bf16.msra.mxu0 0
    %960 = vmatprep.subr.bf16.mxu0 0
    %961 = vmatpush1.bf16.msra.mxu0 0
    %962 = vmatprep.subr.bf16.mxu0 0
    %963 = vmatpush1.bf16.msra.mxu0 0
    %964 = vmatprep.mubr.bf16.mxu0 0
    %965 = vmatmul.mubr.bf16.gmra.mrb[0].mxu0 %v912
    %v966 = vpop.f32.mrb[0].mxu0
    %v967 = vadd.f32 %v885, %v966
    %v968 = vpop.f32.mrb[0].mxu0
    %v969 = vpop.f32.mrb[0].mxu0
    %v970 = vadd.f32 %v885, %v969
    %v971 = vpop.f32.mrb[0].mxu0
    %972 = vmatprep.mubr.bf16.mxu0 0
    %973 = vmatmul.mubr.bf16.gmra.mrb[0].mxu0 %v915
    %v974 = vpop.f32.mrb[0].mxu0
    %v975 = vadd.f32 %v885, %v974
    %v976 = vpop.f32.mrb[0].mxu0
    %v977 = vpop.f32.mrb[0].mxu0
    %v978 = vadd.f32 %v885, %v977
    %v979 = vpop.f32.mrb[0].mxu0
    %980 = vmatprep.mubr.bf16.mxu0 0
    %981 = vmatmul.mubr.bf16.gmra.mrb[0].mxu0 %v918
    %v982 = vpop.f32.mrb[0].mxu0
    %v983 = vadd.f32 %v885, %v982
    %v984 = vpop.f32.mrb[0].mxu0
    %v985 = vpop.f32.mrb[0].mxu0
    %v986 = vadd.f32 %v885, %v985
    %v987 = vpop.f32.mrb[0].mxu0
    %988 = vmatprep.mubr.bf16.mxu0 0
    %989 = vmatmul.mubr.bf16.gmra.mrb[0].mxu0 %v921
    %v990 = vpop.f32.mrb[0].mxu0
    %v991 = vadd.f32 %v885, %v990
    %v992 = vpop.f32.mrb[0].mxu0
    %v993 = vpop.f32.mrb[0].mxu0
    %v994 = vadd.f32 %v885, %v993
    %v995 = vpop.f32.mrb[0].mxu0
    %996 = vmatprep.mubr.bf16.mxu0 0
    %997 = vmatmul.mubr.bf16.gmra.mrb[0].mxu0 %v924
    %v998 = vpop.f32.mrb[0].mxu0
    %v999 = vadd.f32 %v885, %v998
    %v1000 = vpop.f32.mrb[0].mxu0
    %v1001 = vpop.f32.mrb[0].mxu0
    %v1002 = vadd.f32 %v885, %v1001
    %v1003 = vpop.f32.mrb[0].mxu0
    %1004 = vmatprep.mubr.bf16.mxu0 0
    %1005 = vmatmul.mubr.bf16.gmra.mrb[0].mxu0 %v927
    %v1006 = vpop.f32.mrb[0].mxu0
    %v1007 = vadd.f32 %v885, %v1006
    %v1008 = vpop.f32.mrb[0].mxu0
    %v1009 = vpop.f32.mrb[0].mxu0
    %v1010 = vadd.f32 %v885, %v1009
    %v1011 = vpop.f32.mrb[0].mxu0
    %1012 = vmatprep.mubr.bf16.mxu0 0
    %1013 = vmatmul.mubr.bf16.gmra.mrb[0].mxu0 %v930
    %v1014 = vpop.f32.mrb[0].mxu0
    %v1015 = vadd.f32 %v885, %v1014
    %v1016 = vpop.f32.mrb[0].mxu0
    %v1017 = vpop.f32.mrb[0].mxu0
    %v1018 = vadd.f32 %v885, %v1017
    %v1019 = vpop.f32.mrb[0].mxu0
    %1020 = vdwg.mxu0
    %v1021 = vadd.f32 %v967, %v612
    %v1022 = vadd.f32 %v970, %v615
    %v1023 = vadd.f32 %v975, %v620
    %v1024 = vadd.f32 %v978, %v623
    %v1025 = vadd.f32 %v983, %v628
    %v1026 = vadd.f32 %v986, %v631
    %v1027 = vadd.f32 %v991, %v636
    %v1028 = vadd.f32 %v994, %v639
    %v1029 = vadd.f32 %v999, %v644
    %v1030 = vadd.f32 %v1002, %v647
    %v1031 = vadd.f32 %v1007, %v652
    %v1032 = vadd.f32 %v1010, %v655
    %v1033 = vadd.f32 %v1015, %v660
    %v1034 = vadd.f32 %v1018, %v663
    %vm1035 = vcmp.ge.f32.partialorder %v1021, 0.0
    %vm1036 = vcmp.ge.f32.partialorder %v1022, 0.0
    %vm1037 = vcmp.ge.f32.partialorder %v1023, 0.0
    %vm1038 = vcmp.ge.f32.partialorder %v1024, 0.0
    %vm1039 = vcmp.ge.f32.partialorder %v1025, 0.0
    %vm1040 = vcmp.ge.f32.partialorder %v1026, 0.0
    %vm1041 = vcmp.ge.f32.partialorder %v1027, 0.0
    %vm1042 = vcmp.ge.f32.partialorder %v1028, 0.0
    %vm1043 = vcmp.ge.f32.partialorder %v1029, 0.0
    %vm1044 = vcmp.ge.f32.partialorder %v1030, 0.0
    %vm1045 = vcmp.ge.f32.partialorder %v1031, 0.0
    %vm1046 = vcmp.ge.f32.partialorder %v1032, 0.0
    %vm1047 = vcmp.ge.f32.partialorder %v1033, 0.0
    %vm1048 = vcmp.ge.f32.partialorder %v1034, 0.0
    %v1049 = vstv %s134
    %v1050 = vmul.f32 %v1049, %v1021
    %v1051 = vmul.f32 %v1049, %v1022
    %v1052 = vmul.f32 %v1049, %v1023
    %v1053 = vmul.f32 %v1049, %v1024
    %v1054 = vmul.f32 %v1049, %v1025
    %v1055 = vmul.f32 %v1049, %v1026
    %v1056 = vmul.f32 %v1049, %v1027
    %v1057 = vmul.f32 %v1049, %v1028
    %v1058 = vmul.f32 %v1049, %v1029
    %v1059 = vmul.f32 %v1049, %v1030
    %v1060 = vmul.f32 %v1049, %v1031
    %v1061 = vmul.f32 %v1049, %v1032
    %v1062 = vmul.f32 %v1049, %v1033
    %v1063 = vmul.f32 %v1049, %v1034
    %v1064 = vsel %vm1035, %v1021, %v1050
    %v1065 = vsel %vm1036, %v1022, %v1051
    %v1066 = vsel %vm1037, %v1023, %v1052
    %v1067 = vsel %vm1038, %v1024, %v1053
    %v1068 = vsel %vm1039, %v1025, %v1054
    %v1069 = vsel %vm1040, %v1026, %v1055
    %v1070 = vsel %vm1041, %v1027, %v1056
    %v1071 = vsel %vm1042, %v1028, %v1057
    %v1072 = vsel %vm1043, %v1029, %v1058
    %v1073 = vsel %vm1044, %v1030, %v1059
    %v1074 = vsel %vm1045, %v1031, %v1060
    %v1075 = vsel %vm1046, %v1032, %v1061
    %v1076 = vsel %vm1047, %v1033, %v1062
    %v1077 = vsel %vm1048, %v1034, %v1063
    %1078 = vst.msk [vmem:[#allocation3] sm:$0xff] %vm181, %v1064
    %1079 = vst.msk [vmem:[#allocation3 + $0x8] sm:$0xff] %vm181, %v1065
    %1080 = vst.msk [vmem:[#allocation3 + $0x10] sm:$0xff] %vm181, %v1066
    %1081 = vst.msk [vmem:[#allocation3 + $0x18] sm:$0xff] %vm181, %v1067
    %1082 = vst.msk [vmem:[#allocation3 + $0x20] sm:$0xff] %vm181, %v1068
    %1083 = vst.msk [vmem:[#allocation3 + $0x28] sm:$0xff] %vm181, %v1069
    %1084 = vst.msk [vmem:[#allocation3 + $0x30] sm:$0xff] %vm181, %v1070
    %1085 = vst.msk [vmem:[#allocation3 + $0x38] sm:$0xff] %vm181, %v1071
    %1086 = vst.msk [vmem:[#allocation3 + $0x40] sm:$0xff] %vm181, %v1072
    %1087 = vst.msk [vmem:[#allocation3 + $0x48] sm:$0xff] %vm181, %v1073
    %1088 = vst.msk [vmem:[#allocation3 + $0x50] sm:$0xff] %vm181, %v1074
    %1089 = vst.msk [vmem:[#allocation3 + $0x58] sm:$0xff] %vm181, %v1075
    %1090 = vst.msk [vmem:[#allocation3 + $0x60] sm:$0xff] %vm181, %v1076
    %1091 = vst.msk [vmem:[#allocation3 + $0x68] sm:$0xf] %vm236, %v1077
    %v1092 = vld [vmem:[#allocation3] ss:$3 sm:$0xff]
    %s1093 = scalar_lea.vmem [#allocation3], 24
    %v1094 = vld [vmem:[%s1093] ss:$3 sm:$0xff]
    %s1095 = scalar_lea.vmem [#allocation3], 48
    %v1096 = vld [vmem:[%s1095] ss:$3 sm:$0xff]
    %s1097 = scalar_lea.vmem [#allocation3], 72
    %v1098 = vld [vmem:[%s1097] ss:$3 sm:$0xff]
    %s1099 = scalar_lea.vmem [#allocation3], 96
    %v1100 = vld [vmem:[%s1099] ss:$3 sm:$0xf]
    %s1101 = scalar_lea.vmem [#allocation3], 1
    %v1102 = vld [vmem:[%s1101] ss:$3 sm:$0xff]
    %s1103 = scalar_lea.vmem [#allocation3], 25
    %v1104 = vld [vmem:[%s1103] ss:$3 sm:$0xff]
    %s1105 = scalar_lea.vmem [#allocation3], 49
    %v1106 = vld [vmem:[%s1105] ss:$3 sm:$0xff]
    %s1107 = scalar_lea.vmem [#allocation3], 73
    %v1108 = vld [vmem:[%s1107] ss:$3 sm:$0xff]
    %s1109 = scalar_lea.vmem [#allocation3], 97
    %v1110 = vld [vmem:[%s1109] ss:$3 sm:$0xf]
    %s1111 = scalar_lea.vmem [#allocation3], 2
    %v1112 = vld [vmem:[%s1111] ss:$3 sm:$0xff]
    %s1113 = scalar_lea.vmem [#allocation3], 26
    %v1114 = vld [vmem:[%s1113] ss:$3 sm:$0xff]
    %s1115 = scalar_lea.vmem [#allocation3], 50
    %v1116 = vld [vmem:[%s1115] ss:$3 sm:$0xff]
    %s1117 = scalar_lea.vmem [#allocation3], 74
    %v1118 = vld [vmem:[%s1117] ss:$3 sm:$0xff]
    %s1119 = scalar_lea.vmem [#allocation3], 98
    %v1120 = vld [vmem:[%s1119] ss:$3 sm:$0xf]
    %v1121 = vmax.f32 %v1092, %v1102
    %v1122 = vmax.f32 %v1094, %v1104
    %v1123 = vmax.f32 %v1096, %v1106
    %v1124 = vmax.f32 %v1098, %v1108
    %v1125 = vmax.f32 %v1100, %v1110
    %v1126 = vmax.f32 %v1121, %v1112
    %v1127 = vmax.f32 %v1122, %v1114
    %v1128 = vmax.f32 %v1123, %v1116
    %v1129 = vmax.f32 %v1124, %v1118
    %v1130 = vmax.f32 %v1125, %v1120
    %v1131 = vld [vmem:[%s8] sm:$0xff]
    %v1132 = vld [vmem:[%s8 + $0x8] sm:$0xff]
    %v1133 = vld [vmem:[%s8 + $0x10] sm:$0xff]
    %v1134 = vld [vmem:[%s8 + $0x18] sm:$0xff]
    %v1135 = vld [vmem:[%s8 + $0x20] sm:$0xff]
    %v1136 = vld [vmem:[%s8 + $0x28] sm:$0xff]
    %v1137 = vld [vmem:[%s8 + $0x30] sm:$0xff]
    %v1138 = vld [vmem:[%s8 + $0x38] sm:$0xff]
    %v1139 = vpack.c.bf16 %v1127, %v1126
    %v1140 = vpack.c.bf16 %v1129, %v1128
    %v1141 = vpack.c.bf16 %v1130, %v1130
    %v1150 = vunpack.c.l.b16 %v1131
    %v1151 = vunpack.c.h.b16 %v1131
    %v1152 = vunpack.c.l.b16 %v1132
    %v1153 = vunpack.c.h.b16 %v1132
    %v1154 = vunpack.c.l.b16 %v1133
    %v1155 = vunpack.c.h.b16 %v1133
    %v1156 = vunpack.c.l.b16 %v1134
    %v1157 = vunpack.c.h.b16 %v1134
    %v1158 = vunpack.c.l.b16 %v1135
    %v1159 = vunpack.c.h.b16 %v1135
    %v1160 = vunpack.c.l.b16 %v1136
    %v1161 = vunpack.c.h.b16 %v1136
    %v1162 = vunpack.c.l.b16 %v1137
    %v1163 = vunpack.c.h.b16 %v1137
    %v1164 = vunpack.c.l.b16 %v1138
    %v1165 = vunpack.c.h.b16 %v1138
    %v1166 = vpack.c.b16 %v1152, %v1150
    %v1167 = vpack.c.b16 %v1153, %v1151
    %v1168 = vpack.c.b16 %v1156, %v1154
    %v1169 = vpack.c.b16 %v1157, %v1155
    %v1170 = vpack.c.b16 %v1160, %v1158
    %v1171 = vpack.c.b16 %v1161, %v1159
    %v1172 = vpack.c.b16 %v1164, %v1162
    %v1173 = vpack.c.b16 %v1165, %v1163
    %v1183 = vsel %vm181, %v1139, 0
    %v1186 = vsel %vm181, %v1140, 0
    %v1189 = vsel %vm181, %v1141, 0
    %1191 = vmatprep.subr.bf16.mxu0 %v1167
    %1192 = vmatpush1.bf16.msra.mxu0 %v1166
    %1193 = vmatprep.subr.bf16.mxu0 %v1169
    %1194 = vmatpush1.bf16.msra.mxu0 %v1168
    %1195 = vmatprep.subr.bf16.mxu0 %v1171
    %1196 = vmatpush1.bf16.msra.mxu0 %v1170
    %1197 = vmatprep.subr.bf16.mxu0 %v1173
    %1198 = vmatpush1.bf16.msra.mxu0 %v1172
    %1199 = vmatprep.subr.bf16.mxu0 0
    %1200 = vmatpush1.bf16.msra.mxu0 0
    %1201 = vmatprep.subr.bf16.mxu0 0
    %1202 = vmatpush1.bf16.msra.mxu0 0
    %1203 = vmatprep.subr.bf16.mxu0 0
    %1204 = vmatpush1.bf16.msra.mxu0 0
    %1205 = vmatprep.subr.bf16.mxu0 0
    %1206 = vmatpush1.bf16.msra.mxu0 0
    %1207 = vmatprep.subr.bf16.mxu0 0
    %1208 = vmatpush1.bf16.msra.mxu0 0
    %1209 = vmatprep.subr.bf16.mxu0 0
    %1210 = vmatpush1.bf16.msra.mxu0 0
    %1211 = vmatprep.subr.bf16.mxu0 0
    %1212 = vmatpush1.bf16.msra.mxu0 0
    %1213 = vmatprep.subr.bf16.mxu0 0
    %1214 = vmatpush1.bf16.msra.mxu0 0
    %1215 = vmatprep.subr.bf16.mxu0 0
    %1216 = vmatpush1.bf16.msra.mxu0 0
    %1217 = vmatprep.subr.bf16.mxu0 0
    %1218 = vmatpush1.bf16.msra.mxu0 0
    %1219 = vmatprep.subr.bf16.mxu0 0
    %1220 = vmatpush1.bf16.msra.mxu0 0
    %1221 = vmatprep.subr.bf16.mxu0 0
    %1222 = vmatpush1.bf16.msra.mxu0 0
    %1223 = vmatprep.mubr.bf16.mxu0 0
    %1224 = vmatmul.mubr.bf16.gmra.mrb[0].mxu0 %v1183
    %v1225 = vpop.f32.mrb[0].mxu0
    %v1226 = vadd.f32 0.0, %v1225
    %v1227 = vpop.f32.mrb[0].mxu0
    %v1228 = vadd.f32 0.0, %v1227
    %v1229 = vpop.f32.mrb[0].mxu0
    %v1230 = vadd.f32 0.0, %v1229
    %v1231 = vpop.f32.mrb[0].mxu0
    %v1232 = vadd.f32 0.0, %v1231
    %1233 = vmatprep.mubr.bf16.mxu0 0
    %1234 = vmatmul.mubr.bf16.gmra.mrb[0].mxu0 %v1186
    %v1235 = vpop.f32.mrb[0].mxu0
    %v1236 = vadd.f32 0.0, %v1235
    %v1237 = vpop.f32.mrb[0].mxu0
    %v1238 = vadd.f32 0.0, %v1237
    %v1239 = vpop.f32.mrb[0].mxu0
    %v1240 = vadd.f32 0.0, %v1239
    %v1241 = vpop.f32.mrb[0].mxu0
    %v1242 = vadd.f32 0.0, %v1241
    %1243 = vmatprep.mubr.bf16.mxu0 0
    %1244 = vmatmul.mubr.bf16.gmra.mrb[0].mxu0 %v1189
    %v1245 = vpop.f32.mrb[0].mxu0
    %v1246 = vadd.f32 0.0, %v1245
    %v1247 = vpop.f32.mrb[0].mxu0
    %v1248 = vadd.f32 0.0, %v1247
    %v1249 = vpop.f32.mrb[0].mxu0
    %v1250 = vpop.f32.mrb[0].mxu0
    %1251 = vdwg.mxu0
    %v1252 = vld [vmem:[%s9] sm:$0x1]
    %v1254 = vlaneseq
    %v1255 = vshrl.u32 %v1254, 7
    %v1256 = vsub.s32 0, %v1255
    %v1257 = vrot.slane %v1252, %v1256
    %v1259 = vadd.f32 %v1226, %v1257
    %v1260 = vadd.f32 %v1230, %v1257
    %v1261 = vadd.f32 %v1236, %v1257
    %v1262 = vadd.f32 %v1240, %v1257
    %v1263 = vadd.f32 %v1246, %v1257
    %vm1264 = vcmp.ge.f32.partialorder %v1259, 0.0
    %vm1265 = vcmp.ge.f32.partialorder %v1260, 0.0
    %vm1266 = vcmp.ge.f32.partialorder %v1261, 0.0
    %vm1267 = vcmp.ge.f32.partialorder %v1262, 0.0
    %vm1268 = vcmp.ge.f32.partialorder %v1263, 0.0
    %v1269 = vstv %s135
    %v1270 = vmul.f32 %v1269, %v1259
    %v1271 = vmul.f32 %v1269, %v1260
    %v1272 = vmul.f32 %v1269, %v1261
    %v1273 = vmul.f32 %v1269, %v1262
    %v1274 = vmul.f32 %v1269, %v1263
    %v1275 = vsel %vm1264, %v1259, %v1270
    %v1276 = vsel %vm1265, %v1260, %v1271
    %v1277 = vsel %vm1266, %v1261, %v1272
    %v1278 = vsel %vm1267, %v1262, %v1273
    %v1279 = vsel %vm1268, %v1263, %v1274
    %v1280 = vld [vmem:[%s10] sm:$0xf]
    %v1281 = vld [vmem:[%s10 + $0x4] sm:$0xf]
    %v1282 = vld [vmem:[%s10 + $0x8] sm:$0xf]
    %v1283 = vld [vmem:[%s10 + $0xc] sm:$0xf]
    %v1284 = vld [vmem:[%s10 + $0x10] sm:$0xf]
    %v1285 = vld [vmem:[%s10 + $0x14] sm:$0xf]
    %v1286 = vld [vmem:[%s10 + $0x18] sm:$0xf]
    %v1287 = vld [vmem:[%s10 + $0x1c] sm:$0xf]
    %v1288 = vld [vmem:[%s10 + $0x20] sm:$0xf]
    %v1289 = vld [vmem:[%s10 + $0x24] sm:$0xf]
    %v1290 = vld [vmem:[%s10 + $0x28] sm:$0xf]
    %v1291 = vld [vmem:[%s10 + $0x2c] sm:$0xf]
    %v1292 = vld [vmem:[%s10 + $0x30] sm:$0xf]
    %v1293 = vld [vmem:[%s10 + $0x34] sm:$0xf]
    %v1294 = vld [vmem:[%s10 + $0x38] sm:$0xf]
    %v1295 = vld [vmem:[%s10 + $0x3c] sm:$0xf]
    %v1296 = vpack.c.bf16 %v1276, %v1275
    %v1297 = vpack.c.bf16 %v1278, %v1277
    %v1298 = vpack.c.bf16 %v1279, %v1279
    %v1299 = vld [vmem:[%s11] sm:$0x1]
    %v1301 = vlaneseq
    %v1302 = vshrl.u32 %v1301, 7
    %v1303 = vsub.s32 0, %v1302
    %v1304 = vrot.slane %v1299, %v1303
    %v1322 = vunpack.c.l.b16 %v1280
    %v1323 = vunpack.c.l.b16 %v1281
    %v1324 = vunpack.c.l.b16 %v1282
    %v1325 = vunpack.c.l.b16 %v1283
    %v1326 = vunpack.c.l.b16 %v1284
    %v1327 = vunpack.c.l.b16 %v1285
    %v1328 = vunpack.c.l.b16 %v1286
    %v1329 = vunpack.c.l.b16 %v1287
    %v1330 = vunpack.c.l.b16 %v1288
    %v1331 = vunpack.c.l.b16 %v1289
    %v1332 = vunpack.c.l.b16 %v1290
    %v1333 = vunpack.c.l.b16 %v1291
    %v1334 = vunpack.c.l.b16 %v1292
    %v1335 = vunpack.c.l.b16 %v1293
    %v1336 = vunpack.c.l.b16 %v1294
    %v1337 = vunpack.c.l.b16 %v1295
    %v1338 = vpack.c.b16 %v1323, %v1322
    %v1339 = vpack.c.b16 %v1325, %v1324
    %v1340 = vpack.c.b16 %v1327, %v1326
    %v1341 = vpack.c.b16 %v1329, %v1328
    %v1342 = vpack.c.b16 %v1331, %v1330
    %v1343 = vpack.c.b16 %v1333, %v1332
    %v1344 = vpack.c.b16 %v1335, %v1334
    %v1345 = vpack.c.b16 %v1337, %v1336
    %1354 = vmatprep.subr.bf16.mxu0 0
    %1355 = vmatpush1.bf16.msra.mxu0 %v1338
    %1356 = vmatprep.subr.bf16.mxu0 0
    %1357 = vmatpush1.bf16.msra.mxu0 %v1339
    %1358 = vmatprep.subr.bf16.mxu0 0
    %1359 = vmatpush1.bf16.msra.mxu0 %v1340
    %1360 = vmatprep.subr.bf16.mxu0 0
    %1361 = vmatpush1.bf16.msra.mxu0 %v1341
    %1362 = vmatprep.subr.bf16.mxu0 0
    %1363 = vmatpush1.bf16.msra.mxu0 %v1342
    %1364 = vmatprep.subr.bf16.mxu0 0
    %1365 = vmatpush1.bf16.msra.mxu0 %v1343
    %1366 = vmatprep.subr.bf16.mxu0 0
    %1367 = vmatpush1.bf16.msra.mxu0 %v1344
    %1368 = vmatprep.subr.bf16.mxu0 0
    %1369 = vmatpush1.bf16.msra.mxu0 %v1345
    %1370 = vmatprep.subr.bf16.mxu0 0
    %1371 = vmatpush1.bf16.msra.mxu0 0
    %1372 = vmatprep.subr.bf16.mxu0 0
    %1373 = vmatpush1.bf16.msra.mxu0 0
    %1374 = vmatprep.subr.bf16.mxu0 0
    %1375 = vmatpush1.bf16.msra.mxu0 0
    %1376 = vmatprep.subr.bf16.mxu0 0
    %1377 = vmatpush1.bf16.msra.mxu0 0
    %1378 = vmatprep.subr.bf16.mxu0 0
    %1379 = vmatpush1.bf16.msra.mxu0 0
    %1380 = vmatprep.subr.bf16.mxu0 0
    %1381 = vmatpush1.bf16.msra.mxu0 0
    %1382 = vmatprep.subr.bf16.mxu0 0
    %1383 = vmatpush1.bf16.msra.mxu0 0
    %1384 = vmatprep.subr.bf16.mxu0 0
    %1385 = vmatpush1.bf16.msra.mxu0 0
    %1386 = vmatprep.mubr.bf16.mxu0 0
    %1387 = vmatmul.mubr.bf16.gmra.mrb[0].mxu0 %v1296
    %v1388 = vpop.f32.mrb[0].mxu0
    %v1389 = vadd.f32 %v1304, %v1388
    %v1390 = vpop.f32.mrb[0].mxu0
    %v1391 = vpop.f32.mrb[0].mxu0
    %v1392 = vadd.f32 %v1304, %v1391
    %v1393 = vpop.f32.mrb[0].mxu0
    %1394 = vmatprep.mubr.bf16.mxu0 0
    %1395 = vmatmul.mubr.bf16.gmra.mrb[0].mxu0 %v1297
    %v1396 = vpop.f32.mrb[0].mxu0
    %v1397 = vadd.f32 %v1304, %v1396
    %v1398 = vpop.f32.mrb[0].mxu0
    %v1399 = vpop.f32.mrb[0].mxu0
    %v1400 = vadd.f32 %v1304, %v1399
    %v1401 = vpop.f32.mrb[0].mxu0
    %1402 = vmatprep.mubr.bf16.mxu0 0
    %1403 = vmatmul.mubr.bf16.gmra.mrb[0].mxu0 %v1298
    %v1404 = vpop.f32.mrb[0].mxu0
    %v1405 = vadd.f32 %v1304, %v1404
    %v1406 = vpop.f32.mrb[0].mxu0
    %v1407 = vpop.f32.mrb[0].mxu0
    %v1408 = vpop.f32.mrb[0].mxu0
    %1409 = vdwg.mxu0
    %v1410 = vadd.f32 %v1389, %v1228
    %v1411 = vadd.f32 %v1392, %v1232
    %v1412 = vadd.f32 %v1397, %v1238
    %v1413 = vadd.f32 %v1400, %v1242
    %v1414 = vadd.f32 %v1405, %v1248
    %vm1415 = vcmp.ge.f32.partialorder %v1410, 0.0
    %vm1416 = vcmp.ge.f32.partialorder %v1411, 0.0
    %vm1417 = vcmp.ge.f32.partialorder %v1412, 0.0
    %vm1418 = vcmp.ge.f32.partialorder %v1413, 0.0
    %vm1419 = vcmp.ge.f32.partialorder %v1414, 0.0
    %v1420 = vstv %s136
    %v1421 = vmul.f32 %v1420, %v1410
    %v1422 = vmul.f32 %v1420, %v1411
    %v1423 = vmul.f32 %v1420, %v1412
    %v1424 = vmul.f32 %v1420, %v1413
    %v1425 = vmul.f32 %v1420, %v1414
    %v1426 = vsel %vm1415, %v1410, %v1421
    %v1427 = vsel %vm1416, %v1411, %v1422
    %v1428 = vsel %vm1417, %v1412, %v1423
    %v1429 = vsel %vm1418, %v1413, %v1424
    %v1430 = vsel %vm1419, %v1414, %v1425
    %1431 = vst [vmem:[#allocation4] sm:$0xff] %v1426
    %1432 = vst [vmem:[#allocation4 + $0x8] sm:$0xff] %v1427
    %1433 = vst [vmem:[#allocation4 + $0x10] sm:$0xff] %v1428
    %1434 = vst [vmem:[#allocation4 + $0x18] sm:$0xff] %v1429
    %1435 = vst [vmem:[#allocation4 + $0x20] sm:$0xf] %v1430
    %v1436 = vld [vmem:[#allocation4] ss:$3 sm:$0xff]
    %s1437 = scalar_lea.vmem [#allocation4], 24
    %v1438 = vld [vmem:[%s1437] ss:$3 sm:$0xf]
    %s1439 = scalar_lea.vmem [#allocation4], 1
    %v1440 = vld [vmem:[%s1439] ss:$3 sm:$0xff]
    %s1441 = scalar_lea.vmem [#allocation4], 25
    %v1442 = vld [vmem:[%s1441] ss:$3 sm:$0xf]
    %s1443 = scalar_lea.vmem [#allocation4], 2
    %v1444 = vld [vmem:[%s1443] ss:$3 sm:$0xff]
    %s1445 = scalar_lea.vmem [#allocation4], 26
    %v1446 = vld [vmem:[%s1445] ss:$3 sm:$0xf]
    %v1447 = vmax.f32 %v1436, %v1440
    %v1448 = vmax.f32 %v1438, %v1442
    %v1449 = vmax.f32 %v1447, %v1444
    %v1450 = vmax.f32 %v1448, %v1446
    %v1451 = vld [vmem:[%s13] sm:$0xf]
    %v1452 = vld [vmem:[%s13 + $0x4] sm:$0xf]
    %v1453 = vld [vmem:[%s13 + $0x8] sm:$0xf]
    %v1454 = vld [vmem:[%s13 + $0xc] sm:$0xf]
    %v1455 = vld [vmem:[%s13 + $0x10] sm:$0xf]
    %v1456 = vld [vmem:[%s13 + $0x14] sm:$0xf]
    %v1457 = vld [vmem:[%s13 + $0x18] sm:$0xf]
    %v1458 = vld [vmem:[%s13 + $0x1c] sm:$0xf]
    %v1459 = vld [vmem:[%s13 + $0x20] sm:$0xf]
    %v1460 = vld [vmem:[%s13 + $0x24] sm:$0xf]
    %v1461 = vld [vmem:[%s13 + $0x28] sm:$0xf]
    %v1462 = vld [vmem:[%s13 + $0x2c] sm:$0xf]
    %v1463 = vld [vmem:[%s13 + $0x30] sm:$0xf]
    %v1464 = vld [vmem:[%s13 + $0x34] sm:$0xf]
    %v1465 = vld [vmem:[%s13 + $0x38] sm:$0xf]
    %v1466 = vld [vmem:[%s13 + $0x3c] sm:$0xf]
    %v1467 = vpack.c.bf16 %v1450, %v1449
    %v1468 = vld [vmem:[%s14] sm:$0x1]
    %v1470 = vlaneseq
    %v1471 = vshrl.u32 %v1470, 7
    %v1472 = vsub.s32 0, %v1471
    %v1473 = vrot.slane %v1468, %v1472
    %v1491 = vunpack.c.l.b16 %v1451
    %v1492 = vunpack.c.l.b16 %v1452
    %v1493 = vunpack.c.l.b16 %v1453
    %v1494 = vunpack.c.l.b16 %v1454
    %v1495 = vunpack.c.l.b16 %v1455
    %v1496 = vunpack.c.l.b16 %v1456
    %v1497 = vunpack.c.l.b16 %v1457
    %v1498 = vunpack.c.l.b16 %v1458
    %v1499 = vunpack.c.l.b16 %v1459
    %v1500 = vunpack.c.l.b16 %v1460
    %v1501 = vunpack.c.l.b16 %v1461
    %v1502 = vunpack.c.l.b16 %v1462
    %v1503 = vunpack.c.l.b16 %v1463
    %v1504 = vunpack.c.l.b16 %v1464
    %v1505 = vunpack.c.l.b16 %v1465
    %v1506 = vunpack.c.l.b16 %v1466
    %v1507 = vpack.c.b16 %v1492, %v1491
    %v1508 = vpack.c.b16 %v1494, %v1493
    %v1509 = vpack.c.b16 %v1496, %v1495
    %v1510 = vpack.c.b16 %v1498, %v1497
    %v1511 = vpack.c.b16 %v1500, %v1499
    %v1512 = vpack.c.b16 %v1502, %v1501
    %v1513 = vpack.c.b16 %v1504, %v1503
    %v1514 = vpack.c.b16 %v1506, %v1505
    %1523 = vmatprep.subr.bf16.mxu0 0
    %1524 = vmatpush1.bf16.msra.mxu0 %v1507
    %1525 = vmatprep.subr.bf16.mxu0 0
    %1526 = vmatpush1.bf16.msra.mxu0 %v1508
    %1527 = vmatprep.subr.bf16.mxu0 0
    %1528 = vmatpush1.bf16.msra.mxu0 %v1509
    %1529 = vmatprep.subr.bf16.mxu0 0
    %1530 = vmatpush1.bf16.msra.mxu0 %v1510
    %1531 = vmatprep.subr.bf16.mxu0 0
    %1532 = vmatpush1.bf16.msra.mxu0 %v1511
    %1533 = vmatprep.subr.bf16.mxu0 0
    %1534 = vmatpush1.bf16.msra.mxu0 %v1512
    %1535 = vmatprep.subr.bf16.mxu0 0
    %1536 = vmatpush1.bf16.msra.mxu0 %v1513
    %1537 = vmatprep.subr.bf16.mxu0 0
    %1538 = vmatpush1.bf16.msra.mxu0 %v1514
    %1539 = vmatprep.subr.bf16.mxu0 0
    %1540 = vmatpush1.bf16.msra.mxu0 0
    %1541 = vmatprep.subr.bf16.mxu0 0
    %1542 = vmatpush1.bf16.msra.mxu0 0
    %1543 = vmatprep.subr.bf16.mxu0 0
    %1544 = vmatpush1.bf16.msra.mxu0 0
    %1545 = vmatprep.subr.bf16.mxu0 0
    %1546 = vmatpush1.bf16.msra.mxu0 0
    %1547 = vmatprep.subr.bf16.mxu0 0
    %1548 = vmatpush1.bf16.msra.mxu0 0
    %1549 = vmatprep.subr.bf16.mxu0 0
    %1550 = vmatpush1.bf16.msra.mxu0 0
    %1551 = vmatprep.subr.bf16.mxu0 0
    %1552 = vmatpush1.bf16.msra.mxu0 0
    %1553 = vmatprep.subr.bf16.mxu0 0
    %1554 = vmatpush1.bf16.msra.mxu0 0
    %1555 = vmatprep.mubr.bf16.mxu0 0
    %1556 = vmatmul.mubr.bf16.gmra.mrb[0].mxu0 %v1467
    %v1557 = vpop.f32.mrb[0].mxu0
    %v1558 = vadd.f32 %v1473, %v1557
    %v1559 = vpop.f32.mrb[0].mxu0
    %v1560 = vpop.f32.mrb[0].mxu0
    %v1561 = vadd.f32 %v1473, %v1560
    %v1562 = vpop.f32.mrb[0].mxu0
    %1563 = vdwg.mxu0
    %vm1564 = vcmp.ge.f32.partialorder %v1558, 0.0
    %vm1565 = vcmp.ge.f32.partialorder %v1561, 0.0
    %v1566 = vstv %s137
    %v1567 = vmul.f32 %v1566, %v1558
    %v1568 = vmul.f32 %v1566, %v1561
    %v1569 = vsel %vm1564, %v1558, %v1567
    %v1570 = vsel %vm1565, %v1561, %v1568
    %v1571 = vld [vmem:[%s15] sm:$0xf]
    %v1572 = vld [vmem:[%s15 + $0x4] sm:$0xf]
    %v1573 = vld [vmem:[%s15 + $0x8] sm:$0xf]
    %v1574 = vld [vmem:[%s15 + $0xc] sm:$0xf]
    %v1575 = vld [vmem:[%s15 + $0x10] sm:$0xf]
    %v1576 = vld [vmem:[%s15 + $0x14] sm:$0xf]
    %v1577 = vld [vmem:[%s15 + $0x18] sm:$0xf]
    %v1578 = vld [vmem:[%s15 + $0x1c] sm:$0xf]
    %v1579 = vld [vmem:[%s15 + $0x20] sm:$0xf]
    %v1580 = vld [vmem:[%s15 + $0x24] sm:$0xf]
    %v1581 = vld [vmem:[%s15 + $0x28] sm:$0xf]
    %v1582 = vld [vmem:[%s15 + $0x2c] sm:$0xf]
    %v1583 = vld [vmem:[%s15 + $0x30] sm:$0xf]
    %v1584 = vld [vmem:[%s15 + $0x34] sm:$0xf]
    %v1585 = vld [vmem:[%s15 + $0x38] sm:$0xf]
    %v1586 = vld [vmem:[%s15 + $0x3c] sm:$0xf]
    %v1587 = vpack.c.bf16 %v1570, %v1569
    %v1588 = vld [vmem:[%s16] sm:$0x1]
    %v1590 = vlaneseq
    %v1591 = vshrl.u32 %v1590, 7
    %v1592 = vsub.s32 0, %v1591
    %v1593 = vrot.slane %v1588, %v1592
    %v1611 = vunpack.c.l.b16 %v1571
    %v1612 = vunpack.c.l.b16 %v1572
    %v1613 = vunpack.c.l.b16 %v1573
    %v1614 = vunpack.c.l.b16 %v1574
    %v1615 = vunpack.c.l.b16 %v1575
    %v1616 = vunpack.c.l.b16 %v1576
    %v1617 = vunpack.c.l.b16 %v1577
    %v1618 = vunpack.c.l.b16 %v1578
    %v1619 = vunpack.c.l.b16 %v1579
    %v1620 = vunpack.c.l.b16 %v1580
    %v1621 = vunpack.c.l.b16 %v1581
    %v1622 = vunpack.c.l.b16 %v1582
    %v1623 = vunpack.c.l.b16 %v1583
    %v1624 = vunpack.c.l.b16 %v1584
    %v1625 = vunpack.c.l.b16 %v1585
    %v1626 = vunpack.c.l.b16 %v1586
    %v1627 = vpack.c.b16 %v1612, %v1611
    %v1628 = vpack.c.b16 %v1614, %v1613
    %v1629 = vpack.c.b16 %v1616, %v1615
    %v1630 = vpack.c.b16 %v1618, %v1617
    %v1631 = vpack.c.b16 %v1620, %v1619
    %v1632 = vpack.c.b16 %v1622, %v1621
    %v1633 = vpack.c.b16 %v1624, %v1623
    %v1634 = vpack.c.b16 %v1626, %v1625
    %1643 = vmatprep.subr.bf16.mxu0 0
    %1644 = vmatpush1.bf16.msra.mxu0 %v1627
    %1645 = vmatprep.subr.bf16.mxu0 0
    %1646 = vmatpush1.bf16.msra.mxu0 %v1628
    %1647 = vmatprep.subr.bf16.mxu0 0
    %1648 = vmatpush1.bf16.msra.mxu0 %v1629
    %1649 = vmatprep.subr.bf16.mxu0 0
    %1650 = vmatpush1.bf16.msra.mxu0 %v1630
    %1651 = vmatprep.subr.bf16.mxu0 0
    %1652 = vmatpush1.bf16.msra.mxu0 %v1631
    %1653 = vmatprep.subr.bf16.mxu0 0
    %1654 = vmatpush1.bf16.msra.mxu0 %v1632
    %1655 = vmatprep.subr.bf16.mxu0 0
    %1656 = vmatpush1.bf16.msra.mxu0 %v1633
    %1657 = vmatprep.subr.bf16.mxu0 0
    %1658 = vmatpush1.bf16.msra.mxu0 %v1634
    %1659 = vmatprep.subr.bf16.mxu0 0
    %1660 = vmatpush1.bf16.msra.mxu0 0
    %1661 = vmatprep.subr.bf16.mxu0 0
    %1662 = vmatpush1.bf16.msra.mxu0 0
    %1663 = vmatprep.subr.bf16.mxu0 0
    %1664 = vmatpush1.bf16.msra.mxu0 0
    %1665 = vmatprep.subr.bf16.mxu0 0
    %1666 = vmatpush1.bf16.msra.mxu0 0
    %1667 = vmatprep.subr.bf16.mxu0 0
    %1668 = vmatpush1.bf16.msra.mxu0 0
    %1669 = vmatprep.subr.bf16.mxu0 0
    %1670 = vmatpush1.bf16.msra.mxu0 0
    %1671 = vmatprep.subr.bf16.mxu0 0
    %1672 = vmatpush1.bf16.msra.mxu0 0
    %1673 = vmatprep.subr.bf16.mxu0 0
    %1674 = vmatpush1.bf16.msra.mxu0 0
    %1675 = vmatprep.mubr.bf16.mxu0 0
    %1676 = vmatmul.mubr.bf16.gmra.mrb[0].mxu0 %v1587
    %v1677 = vpop.f32.mrb[0].mxu0
    %v1678 = vadd.f32 %v1593, %v1677
    %v1679 = vpop.f32.mrb[0].mxu0
    %v1680 = vpop.f32.mrb[0].mxu0
    %v1681 = vadd.f32 %v1593, %v1680
    %v1682 = vpop.f32.mrb[0].mxu0
    %1683 = vdwg.mxu0
    %v1684 = vadd.f32 %v1678, %v1449
    %v1685 = vadd.f32 %v1681, %v1450
    %vm1686 = vcmp.ge.f32.partialorder %v1684, 0.0
    %vm1687 = vcmp.ge.f32.partialorder %v1685, 0.0
    %v1688 = vstv %s138
    %v1689 = vmul.f32 %v1688, %v1684
    %v1690 = vmul.f32 %v1688, %v1685
    %v1691 = vsel %vm1686, %v1684, %v1689
    %v1692 = vsel %vm1687, %v1685, %v1690
    %1693 = vst [vmem:[#allocation5] sm:$0xff] %v1691
    %1694 = vst [vmem:[#allocation5 + $0x8] sm:$0xf] %v1692
    %v1695 = vld [vmem:[#allocation5] ss:$3 sm:$0xf]
    %s1696 = scalar_lea.vmem [#allocation5], 1
    %v1697 = vld [vmem:[%s1696] ss:$3 sm:$0xf]
    %s1698 = scalar_lea.vmem [#allocation5], 2
    %v1699 = vld [vmem:[%s1698] ss:$3 sm:$0xf]
    %v1700 = vmax.f32 %v1695, %v1697
    %v1701 = vmax.f32 %v1700, %v1699
    %v1704 = vunpack.c.l.s4 1983009808
    %v1705 = vunpack.c.0.s8 %v1704
    %v1706 = vlaneseq
    %v1707 = vshrl.u32 %v1706, 7
    %v1708 = vsub.s32 %v1705, %v1707
    %v1709 = vrot.slane %v1701, %v1708
    %v1710 = vcombine.high %v1709, %v1709
    %vm1713 = vcmask 1041408
    %v1714 = vsel %vm1713, %v1709, 0.0
    %v1715 = vrot.slane %v1714, 4
    %v1716 = vadd.f32 %v1714, %v1715
    %v1717 = vrot.slane %v1716, 2
    %v1718 = vadd.f32 %v1716, %v1717
    %v1719 = vrot.slane %v1718, 1
    %v1720 = vadd.f32 %v1718, %v1719
    %v1721 = vsel %vm1713, %v1710, 0.0
    %v1722 = vrot.slane %v1721, 4
    %v1723 = vadd.f32 %v1721, %v1722
    %v1724 = vrot.slane %v1723, 2
    %v1725 = vadd.f32 %v1723, %v1724
    %v1726 = vrot.slane %v1725, 1
    %v1727 = vadd.f32 %v1725, %v1726
    %v1728 = vld [vmem:[#allocation2] sm:$0x3]
    %vm1731 = vcmask 1041409
    %v1732 = vsel %vm1731, %v1727, %v1720
    %v1734 = vadd.f32 %v1728, %v1732
    %1735 = vst [vmem:[#allocation2] sm:$0x3] %v1734
    // Predicated region
    $region98: #{resnet4spex_forward_ntc.1} parent=1 // pred_check
      %p1736 = pneg %p128
    $region99: #{resnet4spex_forward_ntc.1} parent=1 // pred_check_branch
      %1738 = sbr.rel (%p1736) target = $region101
    $region100: #{resnet4spex_forward_ntc.1} parent=1 // pred_region
      %v1739 = vld [vmem:[#allocation2] sm:$0x3]
      %v1740 = vmul.f32 %v1739, 0.5
      %v1741 = vld [vmem:[%s18] sm:$0xf]
      %v1742 = vld [vmem:[%s18 + $0x4] sm:$0xf]
      %v1743 = vld [vmem:[%s18 + $0x8] sm:$0xf]
      %v1744 = vld [vmem:[%s18 + $0xc] sm:$0xf]
      %v1745 = vld [vmem:[%s18 + $0x10] sm:$0xf]
      %v1746 = vld [vmem:[%s18 + $0x14] sm:$0xf]
      %v1747 = vld [vmem:[%s18 + $0x18] sm:$0xf]
      %v1748 = vld [vmem:[%s18 + $0x1c] sm:$0xf]
      %v1749 = vld [vmem:[%s18 + $0x20] sm:$0xf]
      %v1750 = vld [vmem:[%s18 + $0x24] sm:$0xf]
      %v1751 = vld [vmem:[%s18 + $0x28] sm:$0xf]
      %v1752 = vld [vmem:[%s18 + $0x2c] sm:$0xf]
      %v1753 = vld [vmem:[%s18 + $0x30] sm:$0xf]
      %v1754 = vld [vmem:[%s18 + $0x34] sm:$0xf]
      %v1755 = vld [vmem:[%s18 + $0x38] sm:$0xf]
      %v1756 = vld [vmem:[%s18 + $0x3c] sm:$0xf]
      %v1757 = vpack.c.bf16 %v1740, %v1740
      %v1758 = vld [vmem:[%s19] sm:$0x1]
      %v1760 = vlaneseq
      %v1761 = vshrl.u32 %v1760, 7
      %v1762 = vsub.s32 0, %v1761
      %v1763 = vrot.slane %v1758, %v1762
      %v1781 = vunpack.c.l.b16 %v1741
      %v1782 = vunpack.c.l.b16 %v1742
      %v1783 = vunpack.c.l.b16 %v1743
      %v1784 = vunpack.c.l.b16 %v1744
      %v1785 = vunpack.c.l.b16 %v1745
      %v1786 = vunpack.c.l.b16 %v1746
      %v1787 = vunpack.c.l.b16 %v1747
      %v1788 = vunpack.c.l.b16 %v1748
      %v1789 = vunpack.c.l.b16 %v1749
      %v1790 = vunpack.c.l.b16 %v1750
      %v1791 = vunpack.c.l.b16 %v1751
      %v1792 = vunpack.c.l.b16 %v1752
      %v1793 = vunpack.c.l.b16 %v1753
      %v1794 = vunpack.c.l.b16 %v1754
      %v1795 = vunpack.c.l.b16 %v1755
      %v1796 = vunpack.c.l.b16 %v1756
      %v1797 = vpack.c.b16 %v1782, %v1781
      %v1798 = vpack.c.b16 %v1784, %v1783
      %v1799 = vpack.c.b16 %v1786, %v1785
      %v1800 = vpack.c.b16 %v1788, %v1787
      %v1801 = vpack.c.b16 %v1790, %v1789
      %v1802 = vpack.c.b16 %v1792, %v1791
      %v1803 = vpack.c.b16 %v1794, %v1793
      %v1804 = vpack.c.b16 %v1796, %v1795
      %1813 = vmatprep.subr.bf16.mxu0 0
      %1814 = vmatpush1.bf16.msra.mxu0 %v1797
      %1815 = vmatprep.subr.bf16.mxu0 0
      %1816 = vmatpush1.bf16.msra.mxu0 %v1798
      %1817 = vmatprep.subr.bf16.mxu0 0
      %1818 = vmatpush1.bf16.msra.mxu0 %v1799
      %1819 = vmatprep.subr.bf16.mxu0 0
      %1820 = vmatpush1.bf16.msra.mxu0 %v1800
      %1821 = vmatprep.subr.bf16.mxu0 0
      %1822 = vmatpush1.bf16.msra.mxu0 %v1801
      %1823 = vmatprep.subr.bf16.mxu0 0
      %1824 = vmatpush1.bf16.msra.mxu0 %v1802
      %1825 = vmatprep.subr.bf16.mxu0 0
      %1826 = vmatpush1.bf16.msra.mxu0 %v1803
      %1827 = vmatprep.subr.bf16.mxu0 0
      %1828 = vmatpush1.bf16.msra.mxu0 %v1804
      %1829 = vmatprep.subr.bf16.mxu0 0
      %1830 = vmatpush1.bf16.msra.mxu0 0
      %1831 = vmatprep.subr.bf16.mxu0 0
      %1832 = vmatpush1.bf16.msra.mxu0 0
      %1833 = vmatprep.subr.bf16.mxu0 0
      %1834 = vmatpush1.bf16.msra.mxu0 0
      %1835 = vmatprep.subr.bf16.mxu0 0
      %1836 = vmatpush1.bf16.msra.mxu0 0
      %1837 = vmatprep.subr.bf16.mxu0 0
      %1838 = vmatpush1.bf16.msra.mxu0 0
      %1839 = vmatprep.subr.bf16.mxu0 0
      %1840 = vmatpush1.bf16.msra.mxu0 0
      %1841 = vmatprep.subr.bf16.mxu0 0
      %1842 = vmatpush1.bf16.msra.mxu0 0
      %1843 = vmatprep.subr.bf16.mxu0 0
      %1844 = vmatpush1.bf16.msra.mxu0 0
      %1845 = vmatprep.mubr.bf16.mxu0 0
      %1846 = vmatmul.mubr.bf16.gmra.mrb[0].mxu0 %v1757
      %v1847 = vpop.f32.mrb[0].mxu0
      %v1848 = vadd.f32 %v1763, %v1847
      %v1849 = vpop.f32.mrb[0].mxu0
      %v1850 = vpop.f32.mrb[0].mxu0
      %v1851 = vpop.f32.mrb[0].mxu0
      %1852 = vdwg.mxu0
      %1853 = vst [vmem:[#allocation12] sm:$0x3] %v1848
    $region101: #{resnet4spex_forward_ntc.1} parent=1 // pred_fallthru
      _
    // Predicated region
    $region102: #{resnet4spex_forward_ntc.1} parent=1 // pred_check
      _
    $region103: #{resnet4spex_forward_ntc.1} parent=1 // pred_check_branch
      %1855 = sbr.rel (0) target = $region105
    $region104: #{resnet4spex_forward_ntc.1} parent=1 // pred_region
      %s1857 = ssub.s32 32, 32
      %1858 = vsyncadd [#allocation7], %s1857
      %s1860 = sshll.u32 [#allocation12], 4
      %s1861 = int_to_ptr.vmem [resolvable:$true] %s1860
      %1863 = dma.vmem_to_hbm [thread:$0]  %s1861, 32, %s20, [#allocation7]
    $region105: #{resnet4spex_forward_ntc.1} parent=1 // pred_fallthru
      _
    // Predicated region
    $region106: #{resnet4spex_forward_ntc.1} parent=1 // pred_check
      _
    $region107: #{resnet4spex_forward_ntc.1} parent=1 // pred_check_branch
      %1865 = sbr.rel (0) target = $region109
    $region108: #{resnet4spex_forward_ntc.1} parent=1 // pred_region
      %1866 = dma.done [#allocation7], 32
    $region109: #{resnet4spex_forward_ntc.1} parent=1 // pred_fallthru
      _
    %1867 = vsyncpa [#allocation7], 1
    %1868 = vsyncpa [#allocation8], 1
    %1869 = vsyncpa [#allocation10], 1

</llo_original>
